<compile_context>
chip_gen: v7x
topology: tpu7x:2x2x1
jax: 0.10.0
libtpu: 0.0.40
codegen_flags: <defaults>
</compile_context>

<pallas_src>
import functools
import numpy as np

import jax
import jax.numpy as jnp
from jax import lax
from jax.experimental import pallas as pl
from jax.experimental.pallas import tpu as pltpu


def _bottleneck_kernel(idx_ref, feats_ref, w_ref, wfold_ref, w2_ref, out_ref,
                       y_ref, sum_ref, ssq_ref, *, eps):
    """Grid = (B, phase, anchor). Phase 0: conv + stats. Phase 1: norm + ReLU + mlp2."""
    ph = pl.program_id(1)
    a = pl.program_id(2)
    A, Cm, P = y_ref.shape
    KS, NN, _ = w_ref.shape
    f32 = jnp.float32
    bf16 = jnp.bfloat16

    @pl.when(ph == 0)
    def _conv_and_stats():
        @pl.when(a == 0)
        def _():
            sum_ref[...] = jnp.zeros_like(sum_ref)
            ssq_ref[...] = jnp.zeros_like(ssq_ref)

        # mlp1 and the BasicSO3Conv channel mixing are pre-folded into one weight and
        # applied BEFORE the neighbour gather (linear maps commute with the gather):
        #   g[k*Cm + o, q] = sum_c Wfold[k*Cm + o, c] * feats[c, q]
        g_all = jnp.dot(wfold_ref[...], feats_ref[...],
                        preferred_element_type=f32)                # (KS*Cm, P) f32

        # Weighted selectors S_k[q, p] = sum_n w[k, n, p] * (idx[n, p] == q),
        # built with KS*NN cheap VPU select/adds (one-hot never materialised as f32
        # matmul operands on its own).
        q_iota = lax.broadcasted_iota(jnp.int32, (P, P), 0)        # q on sublanes
        w_all = w_ref[...].astype(f32)                             # (KS, NN, P)
        s_parts = []
        g_parts = []
        for k in range(KS):
            s_k = jnp.zeros((P, P), f32)
            for n in range(NN):
                sel = idx_ref[n:n + 1, :] == q_iota                # (P, P) bool
                s_k = s_k + jnp.where(sel, w_all[k, n:n + 1, :], 0.0)
            s_parts.append(s_k)
            g_parts.append(g_all[k * Cm:(k + 1) * Cm, :])
        s_cat = jnp.concatenate(s_parts, axis=0)                   # (KS*P, P)
        g_cat = jnp.concatenate(g_parts, axis=1)                   # (Cm, KS*P)

        # Single fused MXU matmul per (batch, anchor): K = KS*P, lane-dense N = P.
        y_a = jnp.dot(g_cat.astype(bf16), s_cat.astype(bf16),
                      preferred_element_type=f32)                  # (Cm, P) f32

        # Stash pre-norm activations and accumulate InstanceNorm statistics
        # (two-pass norm across the anchor grid axis, P3 accumulator pattern).
        y_ref[a] = y_a
        sum_ref[...] += jnp.sum(y_a, axis=1, keepdims=True)        # (Cm, 1)
        ssq_ref[...] += jnp.sum(y_a * y_a, axis=1, keepdims=True)  # (Cm, 1)

    @pl.when(ph == 1)
    def _norm_relu_mlp2():
        inv_count = 1.0 / float(A * P)
        mean = sum_ref[...] * inv_count                            # (Cm, 1)
        var = ssq_ref[...] * inv_count - mean * mean
        inv = lax.rsqrt(var + eps)
        z = jnp.maximum((y_ref[a] - mean) * inv, 0.0)              # (Cm, P) f32
        out_ref[...] = jnp.dot(w2_ref[...], z.astype(bf16),
                               preferred_element_type=f32).astype(out_ref.dtype)


def resnet_bottleneck_block_pallas(feats, inter_idx, inter_w,
                                   w_mlp1, w_conv, w_mlp2, eps=1e-5):
    """
    feats     : [B, Cin, P, A]        (PyTorch NCHW: H = points, W = anchors)
    inter_idx : [B, P, NN]  int       neighbour point indices (values in [0, P))
    inter_w   : [B, P, A, KS, NN]     inter-conv kernel weights
    w_mlp1    : [Cm, Cin]             self.mlp1.weight   (Cm = dim_out // 4)
    w_conv    : [Cm, Cm*KS]           BasicSO3Conv weight inside InterSO3Conv
    w_mlp2    : [Cout, Cm]            self.mlp2.weight   (Cout = dim_out)
    returns   : [B, Cout, P, A]
    """
    B, Cin, P, A = feats.shape
    _, _, _, KS, NN = inter_w.shape
    Cm = w_mlp1.shape[0]
    Cout = w_mlp2.shape[0]
    f32 = jnp.float32
    bf16 = jnp.bfloat16

    # ---- layout plumbing: lane-dense (P last) kernel layouts, bf16 MXU operands ----
    feats_k = jnp.transpose(feats, (0, 3, 1, 2)).astype(bf16)        # [B, A, Cin, P]
    idx_k = jnp.transpose(inter_idx.astype(jnp.int32), (0, 2, 1))    # [B, NN, P]
    w_k = jnp.transpose(inter_w, (0, 2, 3, 4, 1)).astype(bf16)       # [B, A, KS, NN, P]

    # Fold mlp1 into the BasicSO3Conv weight:
    #   Wfold[k, o, c] = sum_m Wconv[o, m*KS + k] * Wmlp1[m, c]
    wc3 = w_conv.reshape(Cm, Cm, KS)
    wfold = jnp.einsum('omk,mc->koc', wc3.astype(f32), w_mlp1.astype(f32))
    wfold = wfold.reshape(KS * Cm, Cin).astype(bf16)                 # [KS*Cm, Cin]
    w2_k = w_mlp2.astype(bf16)                                       # [Cout, Cm]

    kernel = functools.partial(_bottleneck_kernel, eps=float(eps))

    out = pl.pallas_call(
        kernel,
        out_shape=jax.ShapeDtypeStruct((B, A, Cout, P), f32),
        grid_spec=pltpu.PrefetchScalarGridSpec(
            num_scalar_prefetch=0,
            grid=(B, 2, A),
            in_specs=[
                # idx: constant across (phase, anchor) -> fetched once per batch
                pl.BlockSpec((None, NN, P), lambda b, ph, a: (b, 0, 0)),
                # feats / inter_w: per-anchor tiles; pinned during phase 1 so the
                # normalisation sweep does not re-DMA them.
                pl.BlockSpec((None, None, Cin, P),
                             lambda b, ph, a: (b, a * (1 - ph), 0, 0)),
                pl.BlockSpec((None, None, KS, NN, P),
                             lambda b, ph, a: (b, a * (1 - ph), 0, 0, 0)),
                pl.BlockSpec((KS * Cm, Cin), lambda b, ph, a: (0, 0)),
                pl.BlockSpec((Cout, Cm), lambda b, ph, a: (0, 0)),
            ],
            # Output block stays parked at anchor 0 during phase 0 (never written,
            # never flushed) and advances per anchor during phase 1.
            out_specs=pl.BlockSpec((None, None, Cout, P),
                                   lambda b, ph, a: (b, a * ph, 0, 0)),
            scratch_shapes=[
                pltpu.VMEM((A, Cm, P), f32),    # pre-norm activations per anchor
                pltpu.VMEM((Cm, 1), f32),       # per-channel running sum
                pltpu.VMEM((Cm, 1), f32),       # per-channel running sum of squares
            ],
        ),
        compiler_params=pltpu.CompilerParams(
            dimension_semantics=("parallel", "arbitrary", "arbitrary"),
            vmem_limit_bytes=32 * 1024 * 1024,
        ),
    )(idx_k, feats_k, w_k, wfold, w2_k)

    # back to PyTorch layout [B, Cout, P, A]
    return jnp.transpose(out, (0, 2, 3, 1))
    # TODO(synk): stride>1 / pooling (sample_idx) path of InterSO3Conv and the
    # SphericalPointCloud xyz/anchor bookkeeping are pass-through and not modelled here.


def resnet_bottleneck_block_reference(feats, inter_idx, inter_w,
                                      w_mlp1, w_conv, w_mlp2, eps=1e-5):
    """Pure-JAX f32 reference with identical semantics (for the correctness check)."""
    B, Cin, P, A = feats.shape
    _, _, _, KS, NN = inter_w.shape
    Cm = w_mlp1.shape[0]

    # mlp1
    fmid = jnp.einsum('mc,bcpa->bmpa', w_mlp1, feats)                    # [B, Cm, P, A]
    # InterSO3Conv: neighbour gather + per-point kernel weights + BasicSO3Conv
    grouped = jax.vmap(lambda f_b, i_b: jnp.take(f_b, i_b, axis=1))(fmid, inter_idx)
    # grouped: [B, Cm, P, NN, A]
    inter_feat = jnp.einsum('bmpna,bpakn->bmkpa', grouped, inter_w)      # [B, Cm, KS, P, A]
    y = jnp.einsum('omk,bmkpa->bopa', w_conv.reshape(Cm, Cm, KS), inter_feat)
    # InstanceNorm2d(affine=False), biased variance + ReLU
    mean = y.mean(axis=(2, 3), keepdims=True)
    var = ((y - mean) ** 2).mean(axis=(2, 3), keepdims=True)
    z = jnp.maximum((y - mean) / jnp.sqrt(var + eps), 0.0)
    # mlp2
    return jnp.einsum('om,bmpa->bopa', w_mlp2, z)


if __name__ == "__main__":
    B, dim_in, dim_out, P, A = 2, 8, 32, 16, 4      # kanchor = 4
    KS, NN = 3, 8                                    # kernel points, neighbours
    Cm = dim_out // 4

    key = jax.random.PRNGKey(0)
    ks = jax.random.split(key, 6)
    # bf16-representable test data, so the bf16 MXU path is compared against the f32
    # reference without input-quantisation noise dominating the tolerance.
    bf16_round = lambda x: x.astype(jnp.bfloat16).astype(jnp.float32)

    feats = bf16_round(jax.random.normal(ks[0], (B, dim_in, P, A), dtype=jnp.float32))
    inter_idx = jax.random.randint(ks[1], (B, P, NN), 0, P, dtype=jnp.int32)
    inter_w = bf16_round(jax.random.uniform(ks[2], (B, P, A, KS, NN), dtype=jnp.float32))
    # TODO(synk): real inter_idx/inter_w come from vgtk's ball-query + anchor-kernel
    # correlation; deterministic random stand-ins are used here.

    w_mlp1 = bf16_round(0.1 * jax.random.normal(ks[3], (Cm, dim_in), dtype=jnp.float32))
    w_conv = bf16_round(0.1 * jax.random.normal(ks[4], (Cm, Cm * KS), dtype=jnp.float32))
    w_mlp2 = bf16_round(0.1 * jax.random.normal(ks[5], (dim_out, Cm), dtype=jnp.float32))

    out = resnet_bottleneck_block_pallas(feats, inter_idx, inter_w,
                                         w_mlp1, w_conv, w_mlp2)
    out = jax.block_until_ready(out)
    assert out.shape == (B, dim_out, P, A)

    ref = resnet_bottleneck_block_reference(feats, inter_idx, inter_w,
                                            w_mlp1, w_conv, w_mlp2)
    np.testing.assert_allclose(np.asarray(out), np.asarray(ref), rtol=2e-2, atol=2e-2)
    print("KERNEL_OK")
</pallas_src>

<mosaic_0001>
module attributes {stable_mosaic.version = 11 : i64} {
  func.func @_bottleneck_kernel(%arg0: i32, %arg1: i32, %arg2: i32, %arg3: memref<1x8x16xi32, #tpu.memory_space<vmem>>, %arg4: memref<1x1x8x16xbf16, #tpu.memory_space<vmem>>, %arg5: memref<1x1x3x8x16xbf16, #tpu.memory_space<vmem>>, %arg6: memref<24x8xbf16, #tpu.memory_space<vmem>>, %arg7: memref<32x8xbf16, #tpu.memory_space<vmem>>, %arg8: memref<1x1x32x16xf32, #tpu.memory_space<vmem>>, %arg9: memref<4x8x16xf32, #tpu.memory_space<vmem>>, %arg10: memref<8x1xf32, #tpu.memory_space<vmem>>, %arg11: memref<8x1xf32, #tpu.memory_space<vmem>>) attributes {dimension_semantics = [#tpu.dimension_semantics<parallel>, #tpu.dimension_semantics<arbitrary>, #tpu.dimension_semantics<arbitrary>], iteration_bounds = array<i64: 2, 2, 4>, scalar_prefetch = 0 : i64, scratch_operands = 3 : i64, tpu.core_type = #tpu.core_type<tc>, window_params = [{transform_indices = @transform_0, window_bounds = array<i64: 1, 8, 16>}, {transform_indices = @transform_1, window_bounds = array<i64: 1, 1, 8, 16>}, {transform_indices = @transform_2, window_bounds = array<i64: 1, 1, 3, 8, 16>}, {pipeline_mode = #tpu.pipeline_mode<synchronous>, transform_indices = @transform_3, window_bounds = array<i64: 24, 8>}, {pipeline_mode = #tpu.pipeline_mode<synchronous>, transform_indices = @transform_4, window_bounds = array<i64: 32, 8>}, {transform_indices = @transform_5, window_bounds = array<i64: 1, 1, 32, 16>}]} {
    %c0_i32 = arith.constant 0 : i32
    %0 = arith.cmpi eq, %arg1, %c0_i32 : i32
    %1 = arith.extui %0 : i1 to i32
    %c0_i32_0 = arith.constant 0 : i32
    %2 = arith.cmpi ne, %1, %c0_i32_0 : i32
    scf.if %2 {
      %c0_i32_2 = arith.constant 0 : i32
      %6 = arith.cmpi eq, %arg2, %c0_i32_2 : i32
      %7 = arith.extui %6 : i1 to i32
      %c0_i32_3 = arith.constant 0 : i32
      %8 = arith.cmpi ne, %7, %c0_i32_3 : i32
      scf.if %8 {
        %cst_119 = arith.constant 0.000000e+00 : f32
        %307 = vector.broadcast %cst_119 : f32 to vector<8x1xf32>
        %c0_120 = arith.constant 0 : index
        %c0_121 = arith.constant 0 : index
        %308 = vector.load %arg10[%c0_120, %c0_121] : memref<8x1xf32, #tpu.memory_space<vmem>>, vector<8x1xf32>
        tpu.vector_store %arg10[%c0_120, %c0_121], %307 {strides = array<i32>} : memref<8x1xf32, #tpu.memory_space<vmem>>, vector<8x1xf32>,
        %cst_122 = arith.constant 0.000000e+00 : f32
        %309 = vector.broadcast %cst_122 : f32 to vector<8x1xf32>
        %c0_123 = arith.constant 0 : index
        %c0_124 = arith.constant 0 : index
        %310 = vector.load %arg11[%c0_123, %c0_124] : memref<8x1xf32, #tpu.memory_space<vmem>>, vector<8x1xf32>
        tpu.vector_store %arg11[%c0_123, %c0_124], %309 {strides = array<i32>} : memref<8x1xf32, #tpu.memory_space<vmem>>, vector<8x1xf32>,
      } else {
      }
      %c0 = arith.constant 0 : index
      %c0_4 = arith.constant 0 : index
      %9 = vector.load %arg6[%c0, %c0_4] : memref<24x8xbf16, #tpu.memory_space<vmem>>, vector<24x8xbf16>
      %c0_5 = arith.constant 0 : index
      %c0_6 = arith.constant 0 : index
      %c0_7 = arith.constant 0 : index
      %c0_8 = arith.constant 0 : index
      %10 = vector.load %arg4[%c0_5, %c0_6, %c0_7, %c0_8] : memref<1x1x8x16xbf16, #tpu.memory_space<vmem>>, vector<1x1x8x16xbf16>
      %11 = vector.shape_cast %10 : vector<1x1x8x16xbf16> to vector<8x16xbf16>
      %cst = arith.constant dense<0.000000e+00> : vector<24x16xf32>
      %12 = tpu.matmul %9, %11, %cst {dimension_numbers = #tpu.dot_dimension_numbers<[1], [0], [0], [1], [0, 0, 1, 1], [], []>} : vector<24x8xbf16>, vector<8x16xbf16>, vector<24x16xf32> -> vector<24x16xf32>
      %13 = tpu.iota {dimensions = array<i32: 0>} : vector<16x16xi32>
      %c0_9 = arith.constant 0 : index
      %c0_10 = arith.constant 0 : index
      %c0_11 = arith.constant 0 : index
      %c0_12 = arith.constant 0 : index
      %c0_13 = arith.constant 0 : index
      %14 = vector.load %arg5[%c0_9, %c0_10, %c0_11, %c0_12, %c0_13] : memref<1x1x3x8x16xbf16, #tpu.memory_space<vmem>>, vector<1x1x3x8x16xbf16>
      %15 = vector.shape_cast %14 : vector<1x1x3x8x16xbf16> to vector<3x8x16xbf16>
      %16 = arith.extf %15 : vector<3x8x16xbf16> to vector<3x8x16xf32>
      %cst_14 = arith.constant 0.000000e+00 : f32
      %17 = vector.broadcast %cst_14 : f32 to vector<16x16xf32>
      %c0_15 = arith.constant 0 : index
      %c0_16 = arith.constant 0 : index
      %c0_17 = arith.constant 0 : index
      %18 = vector.load %arg3[%c0_15, %c0_16, %c0_17] : memref<1x8x16xi32, #tpu.memory_space<vmem>>, vector<1x1x16xi32>
      %19 = vector.shape_cast %18 : vector<1x1x16xi32> to vector<1x16xi32>
      %20 = vector.broadcast %19 : vector<1x16xi32> to vector<16x16xi32>
      %21 = arith.cmpi eq, %20, %13 : vector<16x16xi32>
      %22 = vector.extract_strided_slice %16 {offsets = [0, 0, 0], sizes = [1, 1, 16], strides = [1, 1, 1]} : vector<3x8x16xf32> to vector<1x1x16xf32>
      %23 = vector.shape_cast %22 : vector<1x1x16xf32> to vector<1x16xf32>
      %cst_18 = arith.constant 0.000000e+00 : f32
      %24 = vector.shape_cast %23 : vector<1x16xf32> to vector<1x16xf32>
      %25 = vector.broadcast %24 : vector<1x16xf32> to vector<16x16xf32>
      %26 = vector.broadcast %cst_18 : f32 to vector<16x16xf32>
      %27 = arith.select %21, %25, %26 : vector<16x16xi1>, vector<16x16xf32>
      %28 = arith.addf %17, %27 : vector<16x16xf32>
      %c0_19 = arith.constant 0 : index
      %c1 = arith.constant 1 : index
      %c0_20 = arith.constant 0 : index
      %29 = vector.load %arg3[%c0_19, %c1, %c0_20] : memref<1x8x16xi32, #tpu.memory_space<vmem>>, vector<1x1x16xi32>
      %30 = vector.shape_cast %29 : vector<1x1x16xi32> to vector<1x16xi32>
      %31 = vector.broadcast %30 : vector<1x16xi32> to vector<16x16xi32>
      %32 = arith.cmpi eq, %31, %13 : vector<16x16xi32>
      %33 = vector.extract_strided_slice %16 {offsets = [0, 1, 0], sizes = [1, 1, 16], strides = [1, 1, 1]} : vector<3x8x16xf32> to vector<1x1x16xf32>
      %34 = vector.shape_cast %33 : vector<1x1x16xf32> to vector<1x16xf32>
      %cst_21 = arith.constant 0.000000e+00 : f32
      %35 = vector.shape_cast %34 : vector<1x16xf32> to vector<1x16xf32>
      %36 = vector.broadcast %35 : vector<1x16xf32> to vector<16x16xf32>
      %37 = vector.broadcast %cst_21 : f32 to vector<16x16xf32>
      %38 = arith.select %32, %36, %37 : vector<16x16xi1>, vector<16x16xf32>
      %39 = arith.addf %28, %38 : vector<16x16xf32>
      %c0_22 = arith.constant 0 : index
      %c2 = arith.constant 2 : index
      %c0_23 = arith.constant 0 : index
      %40 = vector.load %arg3[%c0_22, %c2, %c0_23] : memref<1x8x16xi32, #tpu.memory_space<vmem>>, vector<1x1x16xi32>
      %41 = vector.shape_cast %40 : vector<1x1x16xi32> to vector<1x16xi32>
      %42 = vector.broadcast %41 : vector<1x16xi32> to vector<16x16xi32>
      %43 = arith.cmpi eq, %42, %13 : vector<16x16xi32>
      %44 = vector.extract_strided_slice %16 {offsets = [0, 2, 0], sizes = [1, 1, 16], strides = [1, 1, 1]} : vector<3x8x16xf32> to vector<1x1x16xf32>
      %45 = vector.shape_cast %44 : vector<1x1x16xf32> to vector<1x16xf32>
      %cst_24 = arith.constant 0.000000e+00 : f32
      %46 = vector.shape_cast %45 : vector<1x16xf32> to vector<1x16xf32>
      %47 = vector.broadcast %46 : vector<1x16xf32> to vector<16x16xf32>
      %48 = vector.broadcast %cst_24 : f32 to vector<16x16xf32>
      %49 = arith.select %43, %47, %48 : vector<16x16xi1>, vector<16x16xf32>
      %50 = arith.addf %39, %49 : vector<16x16xf32>
      %c0_25 = arith.constant 0 : index
      %c3 = arith.constant 3 : index
      %c0_26 = arith.constant 0 : index
      %51 = vector.load %arg3[%c0_25, %c3, %c0_26] : memref<1x8x16xi32, #tpu.memory_space<vmem>>, vector<1x1x16xi32>
      %52 = vector.shape_cast %51 : vector<1x1x16xi32> to vector<1x16xi32>
      %53 = vector.broadcast %52 : vector<1x16xi32> to vector<16x16xi32>
      %54 = arith.cmpi eq, %53, %13 : vector<16x16xi32>
      %55 = vector.extract_strided_slice %16 {offsets = [0, 3, 0], sizes = [1, 1, 16], strides = [1, 1, 1]} : vector<3x8x16xf32> to vector<1x1x16xf32>
      %56 = vector.shape_cast %55 : vector<1x1x16xf32> to vector<1x16xf32>
      %cst_27 = arith.constant 0.000000e+00 : f32
      %57 = vector.shape_cast %56 : vector<1x16xf32> to vector<1x16xf32>
      %58 = vector.broadcast %57 : vector<1x16xf32> to vector<16x16xf32>
      %59 = vector.broadcast %cst_27 : f32 to vector<16x16xf32>
      %60 = arith.select %54, %58, %59 : vector<16x16xi1>, vector<16x16xf32>
      %61 = arith.addf %50, %60 : vector<16x16xf32>
      %c0_28 = arith.constant 0 : index
      %c4 = arith.constant 4 : index
      %c0_29 = arith.constant 0 : index
      %62 = vector.load %arg3[%c0_28, %c4, %c0_29] : memref<1x8x16xi32, #tpu.memory_space<vmem>>, vector<1x1x16xi32>
      %63 = vector.shape_cast %62 : vector<1x1x16xi32> to vector<1x16xi32>
      %64 = vector.broadcast %63 : vector<1x16xi32> to vector<16x16xi32>
      %65 = arith.cmpi eq, %64, %13 : vector<16x16xi32>
      %66 = vector.extract_strided_slice %16 {offsets = [0, 4, 0], sizes = [1, 1, 16], strides = [1, 1, 1]} : vector<3x8x16xf32> to vector<1x1x16xf32>
      %67 = vector.shape_cast %66 : vector<1x1x16xf32> to vector<1x16xf32>
      %cst_30 = arith.constant 0.000000e+00 : f32
      %68 = vector.shape_cast %67 : vector<1x16xf32> to vector<1x16xf32>
      %69 = vector.broadcast %68 : vector<1x16xf32> to vector<16x16xf32>
      %70 = vector.broadcast %cst_30 : f32 to vector<16x16xf32>
      %71 = arith.select %65, %69, %70 : vector<16x16xi1>, vector<16x16xf32>
      %72 = arith.addf %61, %71 : vector<16x16xf32>
      %c0_31 = arith.constant 0 : index
      %c5 = arith.constant 5 : index
      %c0_32 = arith.constant 0 : index
      %73 = vector.load %arg3[%c0_31, %c5, %c0_32] : memref<1x8x16xi32, #tpu.memory_space<vmem>>, vector<1x1x16xi32>
      %74 = vector.shape_cast %73 : vector<1x1x16xi32> to vector<1x16xi32>
      %75 = vector.broadcast %74 : vector<1x16xi32> to vector<16x16xi32>
      %76 = arith.cmpi eq, %75, %13 : vector<16x16xi32>
      %77 = vector.extract_strided_slice %16 {offsets = [0, 5, 0], sizes = [1, 1, 16], strides = [1, 1, 1]} : vector<3x8x16xf32> to vector<1x1x16xf32>
      %78 = vector.shape_cast %77 : vector<1x1x16xf32> to vector<1x16xf32>
      %cst_33 = arith.constant 0.000000e+00 : f32
      %79 = vector.shape_cast %78 : vector<1x16xf32> to vector<1x16xf32>
      %80 = vector.broadcast %79 : vector<1x16xf32> to vector<16x16xf32>
      %81 = vector.broadcast %cst_33 : f32 to vector<16x16xf32>
      %82 = arith.select %76, %80, %81 : vector<16x16xi1>, vector<16x16xf32>
      %83 = arith.addf %72, %82 : vector<16x16xf32>
      %c0_34 = arith.constant 0 : index
      %c6 = arith.constant 6 : index
      %c0_35 = arith.constant 0 : index
      %84 = vector.load %arg3[%c0_34, %c6, %c0_35] : memref<1x8x16xi32, #tpu.memory_space<vmem>>, vector<1x1x16xi32>
      %85 = vector.shape_cast %84 : vector<1x1x16xi32> to vector<1x16xi32>
      %86 = vector.broadcast %85 : vector<1x16xi32> to vector<16x16xi32>
      %87 = arith.cmpi eq, %86, %13 : vector<16x16xi32>
      %88 = vector.extract_strided_slice %16 {offsets = [0, 6, 0], sizes = [1, 1, 16], strides = [1, 1, 1]} : vector<3x8x16xf32> to vector<1x1x16xf32>
      %89 = vector.shape_cast %88 : vector<1x1x16xf32> to vector<1x16xf32>
      %cst_36 = arith.constant 0.000000e+00 : f32
      %90 = vector.shape_cast %89 : vector<1x16xf32> to vector<1x16xf32>
      %91 = vector.broadcast %90 : vector<1x16xf32> to vector<16x16xf32>
      %92 = vector.broadcast %cst_36 : f32 to vector<16x16xf32>
      %93 = arith.select %87, %91, %92 : vector<16x16xi1>, vector<16x16xf32>
      %94 = arith.addf %83, %93 : vector<16x16xf32>
      %c0_37 = arith.constant 0 : index
      %c7 = arith.constant 7 : index
      %c0_38 = arith.constant 0 : index
      %95 = vector.load %arg3[%c0_37, %c7, %c0_38] : memref<1x8x16xi32, #tpu.memory_space<vmem>>, vector<1x1x16xi32>
      %96 = vector.shape_cast %95 : vector<1x1x16xi32> to vector<1x16xi32>
      %97 = vector.broadcast %96 : vector<1x16xi32> to vector<16x16xi32>
      %98 = arith.cmpi eq, %97, %13 : vector<16x16xi32>
      %99 = vector.extract_strided_slice %16 {offsets = [0, 7, 0], sizes = [1, 1, 16], strides = [1, 1, 1]} : vector<3x8x16xf32> to vector<1x1x16xf32>
      %100 = vector.shape_cast %99 : vector<1x1x16xf32> to vector<1x16xf32>
      %cst_39 = arith.constant 0.000000e+00 : f32
      %101 = vector.shape_cast %100 : vector<1x16xf32> to vector<1x16xf32>
      %102 = vector.broadcast %101 : vector<1x16xf32> to vector<16x16xf32>
      %103 = vector.broadcast %cst_39 : f32 to vector<16x16xf32>
      %104 = arith.select %98, %102, %103 : vector<16x16xi1>, vector<16x16xf32>
      %105 = arith.addf %94, %104 : vector<16x16xf32>
      %106 = vector.extract_strided_slice %12 {offsets = [0, 0], sizes = [8, 16], strides = [1, 1]} : vector<24x16xf32> to vector<8x16xf32>
      %cst_40 = arith.constant 0.000000e+00 : f32
      %107 = vector.broadcast %cst_40 : f32 to vector<16x16xf32>
      %c0_41 = arith.constant 0 : index
      %c0_42 = arith.constant 0 : index
      %c0_43 = arith.constant 0 : index
      %108 = vector.load %arg3[%c0_41, %c0_42, %c0_43] : memref<1x8x16xi32, #tpu.memory_space<vmem>>, vector<1x1x16xi32>
      %109 = vector.shape_cast %108 : vector<1x1x16xi32> to vector<1x16xi32>
      %110 = vector.broadcast %109 : vector<1x16xi32> to vector<16x16xi32>
      %111 = arith.cmpi eq, %110, %13 : vector<16x16xi32>
      %112 = vector.extract_strided_slice %16 {offsets = [1, 0, 0], sizes = [1, 1, 16], strides = [1, 1, 1]} : vector<3x8x16xf32> to vector<1x1x16xf32>
      %113 = vector.shape_cast %112 : vector<1x1x16xf32> to vector<1x16xf32>
      %cst_44 = arith.constant 0.000000e+00 : f32
      %114 = vector.shape_cast %113 : vector<1x16xf32> to vector<1x16xf32>
      %115 = vector.broadcast %114 : vector<1x16xf32> to vector<16x16xf32>
      %116 = vector.broadcast %cst_44 : f32 to vector<16x16xf32>
      %117 = arith.select %111, %115, %116 : vector<16x16xi1>, vector<16x16xf32>
      %118 = arith.addf %107, %117 : vector<16x16xf32>
      %c0_45 = arith.constant 0 : index
      %c1_46 = arith.constant 1 : index
      %c0_47 = arith.constant 0 : index
      %119 = vector.load %arg3[%c0_45, %c1_46, %c0_47] : memref<1x8x16xi32, #tpu.memory_space<vmem>>, vector<1x1x16xi32>
      %120 = vector.shape_cast %119 : vector<1x1x16xi32> to vector<1x16xi32>
      %121 = vector.broadcast %120 : vector<1x16xi32> to vector<16x16xi32>
      %122 = arith.cmpi eq, %121, %13 : vector<16x16xi32>
      %123 = vector.extract_strided_slice %16 {offsets = [1, 1, 0], sizes = [1, 1, 16], strides = [1, 1, 1]} : vector<3x8x16xf32> to vector<1x1x16xf32>
      %124 = vector.shape_cast %123 : vector<1x1x16xf32> to vector<1x16xf32>
      %cst_48 = arith.constant 0.000000e+00 : f32
      %125 = vector.shape_cast %124 : vector<1x16xf32> to vector<1x16xf32>
      %126 = vector.broadcast %125 : vector<1x16xf32> to vector<16x16xf32>
      %127 = vector.broadcast %cst_48 : f32 to vector<16x16xf32>
      %128 = arith.select %122, %126, %127 : vector<16x16xi1>, vector<16x16xf32>
      %129 = arith.addf %118, %128 : vector<16x16xf32>
      %c0_49 = arith.constant 0 : index
      %c2_50 = arith.constant 2 : index
      %c0_51 = arith.constant 0 : index
      %130 = vector.load %arg3[%c0_49, %c2_50, %c0_51] : memref<1x8x16xi32, #tpu.memory_space<vmem>>, vector<1x1x16xi32>
      %131 = vector.shape_cast %130 : vector<1x1x16xi32> to vector<1x16xi32>
      %132 = vector.broadcast %131 : vector<1x16xi32> to vector<16x16xi32>
      %133 = arith.cmpi eq, %132, %13 : vector<16x16xi32>
      %134 = vector.extract_strided_slice %16 {offsets = [1, 2, 0], sizes = [1, 1, 16], strides = [1, 1, 1]} : vector<3x8x16xf32> to vector<1x1x16xf32>
      %135 = vector.shape_cast %134 : vector<1x1x16xf32> to vector<1x16xf32>
      %cst_52 = arith.constant 0.000000e+00 : f32
      %136 = vector.shape_cast %135 : vector<1x16xf32> to vector<1x16xf32>
      %137 = vector.broadcast %136 : vector<1x16xf32> to vector<16x16xf32>
      %138 = vector.broadcast %cst_52 : f32 to vector<16x16xf32>
      %139 = arith.select %133, %137, %138 : vector<16x16xi1>, vector<16x16xf32>
      %140 = arith.addf %129, %139 : vector<16x16xf32>
      %c0_53 = arith.constant 0 : index
      %c3_54 = arith.constant 3 : index
      %c0_55 = arith.constant 0 : index
      %141 = vector.load %arg3[%c0_53, %c3_54, %c0_55] : memref<1x8x16xi32, #tpu.memory_space<vmem>>, vector<1x1x16xi32>
      %142 = vector.shape_cast %141 : vector<1x1x16xi32> to vector<1x16xi32>
      %143 = vector.broadcast %142 : vector<1x16xi32> to vector<16x16xi32>
      %144 = arith.cmpi eq, %143, %13 : vector<16x16xi32>
      %145 = vector.extract_strided_slice %16 {offsets = [1, 3, 0], sizes = [1, 1, 16], strides = [1, 1, 1]} : vector<3x8x16xf32> to vector<1x1x16xf32>
      %146 = vector.shape_cast %145 : vector<1x1x16xf32> to vector<1x16xf32>
      %cst_56 = arith.constant 0.000000e+00 : f32
      %147 = vector.shape_cast %146 : vector<1x16xf32> to vector<1x16xf32>
      %148 = vector.broadcast %147 : vector<1x16xf32> to vector<16x16xf32>
      %149 = vector.broadcast %cst_56 : f32 to vector<16x16xf32>
      %150 = arith.select %144, %148, %149 : vector<16x16xi1>, vector<16x16xf32>
      %151 = arith.addf %140, %150 : vector<16x16xf32>
      %c0_57 = arith.constant 0 : index
      %c4_58 = arith.constant 4 : index
      %c0_59 = arith.constant 0 : index
      %152 = vector.load %arg3[%c0_57, %c4_58, %c0_59] : memref<1x8x16xi32, #tpu.memory_space<vmem>>, vector<1x1x16xi32>
      %153 = vector.shape_cast %152 : vector<1x1x16xi32> to vector<1x16xi32>
      %154 = vector.broadcast %153 : vector<1x16xi32> to vector<16x16xi32>
      %155 = arith.cmpi eq, %154, %13 : vector<16x16xi32>
      %156 = vector.extract_strided_slice %16 {offsets = [1, 4, 0], sizes = [1, 1, 16], strides = [1, 1, 1]} : vector<3x8x16xf32> to vector<1x1x16xf32>
      %157 = vector.shape_cast %156 : vector<1x1x16xf32> to vector<1x16xf32>
      %cst_60 = arith.constant 0.000000e+00 : f32
      %158 = vector.shape_cast %157 : vector<1x16xf32> to vector<1x16xf32>
      %159 = vector.broadcast %158 : vector<1x16xf32> to vector<16x16xf32>
      %160 = vector.broadcast %cst_60 : f32 to vector<16x16xf32>
      %161 = arith.select %155, %159, %160 : vector<16x16xi1>, vector<16x16xf32>
      %162 = arith.addf %151, %161 : vector<16x16xf32>
      %c0_61 = arith.constant 0 : index
      %c5_62 = arith.constant 5 : index
      %c0_63 = arith.constant 0 : index
      %163 = vector.load %arg3[%c0_61, %c5_62, %c0_63] : memref<1x8x16xi32, #tpu.memory_space<vmem>>, vector<1x1x16xi32>
      %164 = vector.shape_cast %163 : vector<1x1x16xi32> to vector<1x16xi32>
      %165 = vector.broadcast %164 : vector<1x16xi32> to vector<16x16xi32>
      %166 = arith.cmpi eq, %165, %13 : vector<16x16xi32>
      %167 = vector.extract_strided_slice %16 {offsets = [1, 5, 0], sizes = [1, 1, 16], strides = [1, 1, 1]} : vector<3x8x16xf32> to vector<1x1x16xf32>
      %168 = vector.shape_cast %167 : vector<1x1x16xf32> to vector<1x16xf32>
      %cst_64 = arith.constant 0.000000e+00 : f32
      %169 = vector.shape_cast %168 : vector<1x16xf32> to vector<1x16xf32>
      %170 = vector.broadcast %169 : vector<1x16xf32> to vector<16x16xf32>
      %171 = vector.broadcast %cst_64 : f32 to vector<16x16xf32>
      %172 = arith.select %166, %170, %171 : vector<16x16xi1>, vector<16x16xf32>
      %173 = arith.addf %162, %172 : vector<16x16xf32>
      %c0_65 = arith.constant 0 : index
      %c6_66 = arith.constant 6 : index
      %c0_67 = arith.constant 0 : index
      %174 = vector.load %arg3[%c0_65, %c6_66, %c0_67] : memref<1x8x16xi32, #tpu.memory_space<vmem>>, vector<1x1x16xi32>
      %175 = vector.shape_cast %174 : vector<1x1x16xi32> to vector<1x16xi32>
      %176 = vector.broadcast %175 : vector<1x16xi32> to vector<16x16xi32>
      %177 = arith.cmpi eq, %176, %13 : vector<16x16xi32>
      %178 = vector.extract_strided_slice %16 {offsets = [1, 6, 0], sizes = [1, 1, 16], strides = [1, 1, 1]} : vector<3x8x16xf32> to vector<1x1x16xf32>
      %179 = vector.shape_cast %178 : vector<1x1x16xf32> to vector<1x16xf32>
      %cst_68 = arith.constant 0.000000e+00 : f32
      %180 = vector.shape_cast %179 : vector<1x16xf32> to vector<1x16xf32>
      %181 = vector.broadcast %180 : vector<1x16xf32> to vector<16x16xf32>
      %182 = vector.broadcast %cst_68 : f32 to vector<16x16xf32>
      %183 = arith.select %177, %181, %182 : vector<16x16xi1>, vector<16x16xf32>
      %184 = arith.addf %173, %183 : vector<16x16xf32>
      %c0_69 = arith.constant 0 : index
      %c7_70 = arith.constant 7 : index
      %c0_71 = arith.constant 0 : index
      %185 = vector.load %arg3[%c0_69, %c7_70, %c0_71] : memref<1x8x16xi32, #tpu.memory_space<vmem>>, vector<1x1x16xi32>
      %186 = vector.shape_cast %185 : vector<1x1x16xi32> to vector<1x16xi32>
      %187 = vector.broadcast %186 : vector<1x16xi32> to vector<16x16xi32>
      %188 = arith.cmpi eq, %187, %13 : vector<16x16xi32>
      %189 = vector.extract_strided_slice %16 {offsets = [1, 7, 0], sizes = [1, 1, 16], strides = [1, 1, 1]} : vector<3x8x16xf32> to vector<1x1x16xf32>
      %190 = vector.shape_cast %189 : vector<1x1x16xf32> to vector<1x16xf32>
      %cst_72 = arith.constant 0.000000e+00 : f32
      %191 = vector.shape_cast %190 : vector<1x16xf32> to vector<1x16xf32>
      %192 = vector.broadcast %191 : vector<1x16xf32> to vector<16x16xf32>
      %193 = vector.broadcast %cst_72 : f32 to vector<16x16xf32>
      %194 = arith.select %188, %192, %193 : vector<16x16xi1>, vector<16x16xf32>
      %195 = arith.addf %184, %194 : vector<16x16xf32>
      %196 = vector.extract_strided_slice %12 {offsets = [8, 0], sizes = [8, 16], strides = [1, 1]} : vector<24x16xf32> to vector<8x16xf32>
      %cst_73 = arith.constant 0.000000e+00 : f32
      %197 = vector.broadcast %cst_73 : f32 to vector<16x16xf32>
      %c0_74 = arith.constant 0 : index
      %c0_75 = arith.constant 0 : index
      %c0_76 = arith.constant 0 : index
      %198 = vector.load %arg3[%c0_74, %c0_75, %c0_76] : memref<1x8x16xi32, #tpu.memory_space<vmem>>, vector<1x1x16xi32>
      %199 = vector.shape_cast %198 : vector<1x1x16xi32> to vector<1x16xi32>
      %200 = vector.broadcast %199 : vector<1x16xi32> to vector<16x16xi32>
      %201 = arith.cmpi eq, %200, %13 : vector<16x16xi32>
      %202 = vector.extract_strided_slice %16 {offsets = [2, 0, 0], sizes = [1, 1, 16], strides = [1, 1, 1]} : vector<3x8x16xf32> to vector<1x1x16xf32>
      %203 = vector.shape_cast %202 : vector<1x1x16xf32> to vector<1x16xf32>
      %cst_77 = arith.constant 0.000000e+00 : f32
      %204 = vector.shape_cast %203 : vector<1x16xf32> to vector<1x16xf32>
      %205 = vector.broadcast %204 : vector<1x16xf32> to vector<16x16xf32>
      %206 = vector.broadcast %cst_77 : f32 to vector<16x16xf32>
      %207 = arith.select %201, %205, %206 : vector<16x16xi1>, vector<16x16xf32>
      %208 = arith.addf %197, %207 : vector<16x16xf32>
      %c0_78 = arith.constant 0 : index
      %c1_79 = arith.constant 1 : index
      %c0_80 = arith.constant 0 : index
      %209 = vector.load %arg3[%c0_78, %c1_79, %c0_80] : memref<1x8x16xi32, #tpu.memory_space<vmem>>, vector<1x1x16xi32>
      %210 = vector.shape_cast %209 : vector<1x1x16xi32> to vector<1x16xi32>
      %211 = vector.broadcast %210 : vector<1x16xi32> to vector<16x16xi32>
      %212 = arith.cmpi eq, %211, %13 : vector<16x16xi32>
      %213 = vector.extract_strided_slice %16 {offsets = [2, 1, 0], sizes = [1, 1, 16], strides = [1, 1, 1]} : vector<3x8x16xf32> to vector<1x1x16xf32>
      %214 = vector.shape_cast %213 : vector<1x1x16xf32> to vector<1x16xf32>
      %cst_81 = arith.constant 0.000000e+00 : f32
      %215 = vector.shape_cast %214 : vector<1x16xf32> to vector<1x16xf32>
      %216 = vector.broadcast %215 : vector<1x16xf32> to vector<16x16xf32>
      %217 = vector.broadcast %cst_81 : f32 to vector<16x16xf32>
      %218 = arith.select %212, %216, %217 : vector<16x16xi1>, vector<16x16xf32>
      %219 = arith.addf %208, %218 : vector<16x16xf32>
      %c0_82 = arith.constant 0 : index
      %c2_83 = arith.constant 2 : index
      %c0_84 = arith.constant 0 : index
      %220 = vector.load %arg3[%c0_82, %c2_83, %c0_84] : memref<1x8x16xi32, #tpu.memory_space<vmem>>, vector<1x1x16xi32>
      %221 = vector.shape_cast %220 : vector<1x1x16xi32> to vector<1x16xi32>
      %222 = vector.broadcast %221 : vector<1x16xi32> to vector<16x16xi32>
      %223 = arith.cmpi eq, %222, %13 : vector<16x16xi32>
      %224 = vector.extract_strided_slice %16 {offsets = [2, 2, 0], sizes = [1, 1, 16], strides = [1, 1, 1]} : vector<3x8x16xf32> to vector<1x1x16xf32>
      %225 = vector.shape_cast %224 : vector<1x1x16xf32> to vector<1x16xf32>
      %cst_85 = arith.constant 0.000000e+00 : f32
      %226 = vector.shape_cast %225 : vector<1x16xf32> to vector<1x16xf32>
      %227 = vector.broadcast %226 : vector<1x16xf32> to vector<16x16xf32>
      %228 = vector.broadcast %cst_85 : f32 to vector<16x16xf32>
      %229 = arith.select %223, %227, %228 : vector<16x16xi1>, vector<16x16xf32>
      %230 = arith.addf %219, %229 : vector<16x16xf32>
      %c0_86 = arith.constant 0 : index
      %c3_87 = arith.constant 3 : index
      %c0_88 = arith.constant 0 : index
      %231 = vector.load %arg3[%c0_86, %c3_87, %c0_88] : memref<1x8x16xi32, #tpu.memory_space<vmem>>, vector<1x1x16xi32>
      %232 = vector.shape_cast %231 : vector<1x1x16xi32> to vector<1x16xi32>
      %233 = vector.broadcast %232 : vector<1x16xi32> to vector<16x16xi32>
      %234 = arith.cmpi eq, %233, %13 : vector<16x16xi32>
      %235 = vector.extract_strided_slice %16 {offsets = [2, 3, 0], sizes = [1, 1, 16], strides = [1, 1, 1]} : vector<3x8x16xf32> to vector<1x1x16xf32>
      %236 = vector.shape_cast %235 : vector<1x1x16xf32> to vector<1x16xf32>
      %cst_89 = arith.constant 0.000000e+00 : f32
      %237 = vector.shape_cast %236 : vector<1x16xf32> to vector<1x16xf32>
      %238 = vector.broadcast %237 : vector<1x16xf32> to vector<16x16xf32>
      %239 = vector.broadcast %cst_89 : f32 to vector<16x16xf32>
      %240 = arith.select %234, %238, %239 : vector<16x16xi1>, vector<16x16xf32>
      %241 = arith.addf %230, %240 : vector<16x16xf32>
      %c0_90 = arith.constant 0 : index
      %c4_91 = arith.constant 4 : index
      %c0_92 = arith.constant 0 : index
      %242 = vector.load %arg3[%c0_90, %c4_91, %c0_92] : memref<1x8x16xi32, #tpu.memory_space<vmem>>, vector<1x1x16xi32>
      %243 = vector.shape_cast %242 : vector<1x1x16xi32> to vector<1x16xi32>
      %244 = vector.broadcast %243 : vector<1x16xi32> to vector<16x16xi32>
      %245 = arith.cmpi eq, %244, %13 : vector<16x16xi32>
      %246 = vector.extract_strided_slice %16 {offsets = [2, 4, 0], sizes = [1, 1, 16], strides = [1, 1, 1]} : vector<3x8x16xf32> to vector<1x1x16xf32>
      %247 = vector.shape_cast %246 : vector<1x1x16xf32> to vector<1x16xf32>
      %cst_93 = arith.constant 0.000000e+00 : f32
      %248 = vector.shape_cast %247 : vector<1x16xf32> to vector<1x16xf32>
      %249 = vector.broadcast %248 : vector<1x16xf32> to vector<16x16xf32>
      %250 = vector.broadcast %cst_93 : f32 to vector<16x16xf32>
      %251 = arith.select %245, %249, %250 : vector<16x16xi1>, vector<16x16xf32>
      %252 = arith.addf %241, %251 : vector<16x16xf32>
      %c0_94 = arith.constant 0 : index
      %c5_95 = arith.constant 5 : index
      %c0_96 = arith.constant 0 : index
      %253 = vector.load %arg3[%c0_94, %c5_95, %c0_96] : memref<1x8x16xi32, #tpu.memory_space<vmem>>, vector<1x1x16xi32>
      %254 = vector.shape_cast %253 : vector<1x1x16xi32> to vector<1x16xi32>
      %255 = vector.broadcast %254 : vector<1x16xi32> to vector<16x16xi32>
      %256 = arith.cmpi eq, %255, %13 : vector<16x16xi32>
      %257 = vector.extract_strided_slice %16 {offsets = [2, 5, 0], sizes = [1, 1, 16], strides = [1, 1, 1]} : vector<3x8x16xf32> to vector<1x1x16xf32>
      %258 = vector.shape_cast %257 : vector<1x1x16xf32> to vector<1x16xf32>
      %cst_97 = arith.constant 0.000000e+00 : f32
      %259 = vector.shape_cast %258 : vector<1x16xf32> to vector<1x16xf32>
      %260 = vector.broadcast %259 : vector<1x16xf32> to vector<16x16xf32>
      %261 = vector.broadcast %cst_97 : f32 to vector<16x16xf32>
      %262 = arith.select %256, %260, %261 : vector<16x16xi1>, vector<16x16xf32>
      %263 = arith.addf %252, %262 : vector<16x16xf32>
      %c0_98 = arith.constant 0 : index
      %c6_99 = arith.constant 6 : index
      %c0_100 = arith.constant 0 : index
      %264 = vector.load %arg3[%c0_98, %c6_99, %c0_100] : memref<1x8x16xi32, #tpu.memory_space<vmem>>, vector<1x1x16xi32>
      %265 = vector.shape_cast %264 : vector<1x1x16xi32> to vector<1x16xi32>
      %266 = vector.broadcast %265 : vector<1x16xi32> to vector<16x16xi32>
      %267 = arith.cmpi eq, %266, %13 : vector<16x16xi32>
      %268 = vector.extract_strided_slice %16 {offsets = [2, 6, 0], sizes = [1, 1, 16], strides = [1, 1, 1]} : vector<3x8x16xf32> to vector<1x1x16xf32>
      %269 = vector.shape_cast %268 : vector<1x1x16xf32> to vector<1x16xf32>
      %cst_101 = arith.constant 0.000000e+00 : f32
      %270 = vector.shape_cast %269 : vector<1x16xf32> to vector<1x16xf32>
      %271 = vector.broadcast %270 : vector<1x16xf32> to vector<16x16xf32>
      %272 = vector.broadcast %cst_101 : f32 to vector<16x16xf32>
      %273 = arith.select %267, %271, %272 : vector<16x16xi1>, vector<16x16xf32>
      %274 = arith.addf %263, %273 : vector<16x16xf32>
      %c0_102 = arith.constant 0 : index
      %c7_103 = arith.constant 7 : index
      %c0_104 = arith.constant 0 : index
      %275 = vector.load %arg3[%c0_102, %c7_103, %c0_104] : memref<1x8x16xi32, #tpu.memory_space<vmem>>, vector<1x1x16xi32>
      %276 = vector.shape_cast %275 : vector<1x1x16xi32> to vector<1x16xi32>
      %277 = vector.broadcast %276 : vector<1x16xi32> to vector<16x16xi32>
      %278 = arith.cmpi eq, %277, %13 : vector<16x16xi32>
      %279 = vector.extract_strided_slice %16 {offsets = [2, 7, 0], sizes = [1, 1, 16], strides = [1, 1, 1]} : vector<3x8x16xf32> to vector<1x1x16xf32>
      %280 = vector.shape_cast %279 : vector<1x1x16xf32> to vector<1x16xf32>
      %cst_105 = arith.constant 0.000000e+00 : f32
      %281 = vector.shape_cast %280 : vector<1x16xf32> to vector<1x16xf32>
      %282 = vector.broadcast %281 : vector<1x16xf32> to vector<16x16xf32>
      %283 = vector.broadcast %cst_105 : f32 to vector<16x16xf32>
      %284 = arith.select %278, %282, %283 : vector<16x16xi1>, vector<16x16xf32>
      %285 = arith.addf %274, %284 : vector<16x16xf32>
      %286 = vector.extract_strided_slice %12 {offsets = [16, 0], sizes = [8, 16], strides = [1, 1]} : vector<24x16xf32> to vector<8x16xf32>
      %287 = tpu.concatenate %105, %195, %285 in 0 : vector<16x16xf32>, vector<16x16xf32>, vector<16x16xf32> -> vector<48x16xf32>
      %288 = tpu.concatenate %106, %196, %286 in 1 : vector<8x16xf32>, vector<8x16xf32>, vector<8x16xf32> -> vector<8x48xf32>
      %289 = arith.truncf %288 : vector<8x48xf32> to vector<8x48xbf16>
      %290 = arith.truncf %287 : vector<48x16xf32> to vector<48x16xbf16>
      %cst_106 = arith.constant dense<0.000000e+00> : vector<8x16xf32>
      %291 = tpu.matmul %289, %290, %cst_106 {dimension_numbers = #tpu.dot_dimension_numbers<[1], [0], [0], [1], [0, 0, 1, 1], [], []>} : vector<8x48xbf16>, vector<48x16xbf16>, vector<8x16xf32> -> vector<8x16xf32>
      %292 = arith.index_cast %arg2 : i32 to index
      %c0_107 = arith.constant 0 : index
      %c0_108 = arith.constant 0 : index
      %293 = vector.load %arg9[%292, %c0_107, %c0_108] : memref<4x8x16xf32, #tpu.memory_space<vmem>>, vector<1x8x16xf32>
      %294 = vector.shape_cast %293 : vector<1x8x16xf32> to vector<8x16xf32>
      %295 = vector.shape_cast %291 : vector<8x16xf32> to vector<1x8x16xf32>
      tpu.vector_store %arg9[%292, %c0_107, %c0_108], %295 {strides = array<i32>} : memref<4x8x16xf32, #tpu.memory_space<vmem>>, vector<1x8x16xf32>,
      %c0_109 = arith.constant 0 : index
      %c0_110 = arith.constant 0 : index
      %296 = vector.load %arg10[%c0_109, %c0_110] : memref<8x1xf32, #tpu.memory_space<vmem>>, vector<8x1xf32>
      %cst_111 = arith.constant dense<0.000000e+00> : vector<8xf32>
      %297 = vector.multi_reduction <add>, %291, %cst_111 [1] : vector<8x16xf32> to vector<8xf32>
      %298 = vector.shape_cast %297 : vector<8xf32> to vector<8x1xf32>
      %299 = arith.addf %296, %298 : vector<8x1xf32>
      %c0_112 = arith.constant 0 : index
      %c0_113 = arith.constant 0 : index
      %300 = vector.load %arg10[%c0_112, %c0_113] : memref<8x1xf32, #tpu.memory_space<vmem>>, vector<8x1xf32>
      tpu.vector_store %arg10[%c0_112, %c0_113], %299 {strides = array<i32>} : memref<8x1xf32, #tpu.memory_space<vmem>>, vector<8x1xf32>,
      %c0_114 = arith.constant 0 : index
      %c0_115 = arith.constant 0 : index
      %301 = vector.load %arg11[%c0_114, %c0_115] : memref<8x1xf32, #tpu.memory_space<vmem>>, vector<8x1xf32>
      %302 = arith.mulf %291, %291 : vector<8x16xf32>
      %cst_116 = arith.constant dense<0.000000e+00> : vector<8xf32>
      %303 = vector.multi_reduction <add>, %302, %cst_116 [1] : vector<8x16xf32> to vector<8xf32>
      %304 = vector.shape_cast %303 : vector<8xf32> to vector<8x1xf32>
      %305 = arith.addf %301, %304 : vector<8x1xf32>
      %c0_117 = arith.constant 0 : index
      %c0_118 = arith.constant 0 : index
      %306 = vector.load %arg11[%c0_117, %c0_118] : memref<8x1xf32, #tpu.memory_space<vmem>>, vector<8x1xf32>
      tpu.vector_store %arg11[%c0_117, %c0_118], %305 {strides = array<i32>} : memref<8x1xf32, #tpu.memory_space<vmem>>, vector<8x1xf32>,
    } else {
    }
    %c1_i32 = arith.constant 1 : i32
    %3 = arith.cmpi eq, %arg1, %c1_i32 : i32
    %4 = arith.extui %3 : i1 to i32
    %c0_i32_1 = arith.constant 0 : i32
    %5 = arith.cmpi ne, %4, %c0_i32_1 : i32
    scf.if %5 {
      %c0 = arith.constant 0 : index
      %c0_2 = arith.constant 0 : index
      %6 = vector.load %arg10[%c0, %c0_2] : memref<8x1xf32, #tpu.memory_space<vmem>>, vector<8x1xf32>
      %cst = arith.constant 1.562500e-02 : f32
      %7 = vector.broadcast %cst : f32 to vector<8x1xf32>
      %8 = arith.mulf %6, %7 : vector<8x1xf32>
      %c0_3 = arith.constant 0 : index
      %c0_4 = arith.constant 0 : index
      %9 = vector.load %arg11[%c0_3, %c0_4] : memref<8x1xf32, #tpu.memory_space<vmem>>, vector<8x1xf32>
      %cst_5 = arith.constant 1.562500e-02 : f32
      %10 = vector.broadcast %cst_5 : f32 to vector<8x1xf32>
      %11 = arith.mulf %9, %10 : vector<8x1xf32>
      %12 = arith.mulf %8, %8 : vector<8x1xf32>
      %13 = arith.subf %11, %12 : vector<8x1xf32>
      %cst_6 = arith.constant 9.99999974E-6 : f32
      %14 = vector.broadcast %cst_6 : f32 to vector<8x1xf32>
      %15 = arith.addf %13, %14 : vector<8x1xf32>
      %16 = math.rsqrt %15 : vector<8x1xf32>
      %17 = arith.index_cast %arg2 : i32 to index
      %c0_7 = arith.constant 0 : index
      %c0_8 = arith.constant 0 : index
      %18 = vector.load %arg9[%17, %c0_7, %c0_8] : memref<4x8x16xf32, #tpu.memory_space<vmem>>, vector<1x8x16xf32>
      %19 = vector.shape_cast %18 : vector<1x8x16xf32> to vector<8x16xf32>
      %20 = vector.broadcast %8 : vector<8x1xf32> to vector<8x16xf32>
      %21 = arith.subf %19, %20 : vector<8x16xf32>
      %22 = vector.broadcast %16 : vector<8x1xf32> to vector<8x16xf32>
      %23 = arith.mulf %21, %22 : vector<8x16xf32>
      %cst_9 = arith.constant 0.000000e+00 : f32
      %24 = vector.broadcast %cst_9 : f32 to vector<8x16xf32>
      %25 = arith.maximumf %23, %24 : vector<8x16xf32>
      %c0_10 = arith.constant 0 : index
      %c0_11 = arith.constant 0 : index
      %26 = vector.load %arg7[%c0_10, %c0_11] : memref<32x8xbf16, #tpu.memory_space<vmem>>, vector<32x8xbf16>
      %27 = arith.truncf %25 : vector<8x16xf32> to vector<8x16xbf16>
      %cst_12 = arith.constant dense<0.000000e+00> : vector<32x16xf32>
      %28 = tpu.matmul %26, %27, %cst_12 {dimension_numbers = #tpu.dot_dimension_numbers<[1], [0], [0], [1], [0, 0, 1, 1], [], []>} : vector<32x8xbf16>, vector<8x16xbf16>, vector<32x16xf32> -> vector<32x16xf32>
      %c0_13 = arith.constant 0 : index
      %c0_14 = arith.constant 0 : index
      %c0_15 = arith.constant 0 : index
      %c0_16 = arith.constant 0 : index
      %29 = vector.load %arg8[%c0_13, %c0_14, %c0_15, %c0_16] : memref<1x1x32x16xf32, #tpu.memory_space<vmem>>, vector<1x1x32x16xf32>
      %30 = vector.shape_cast %29 : vector<1x1x32x16xf32> to vector<32x16xf32>
      %31 = vector.shape_cast %28 : vector<32x16xf32> to vector<1x1x32x16xf32>
      tpu.vector_store %arg8[%c0_13, %c0_14, %c0_15, %c0_16], %31 {strides = array<i32>} : memref<1x1x32x16xf32, #tpu.memory_space<vmem>>, vector<1x1x32x16xf32>,
    } else {
    }
    return
  }
  func.func @transform_0(%arg0: i32, %arg1: i32, %arg2: i32) -> (i32, i32, i32) {
    %c0_i32 = arith.constant 0 : i32
    %c0_i32_0 = arith.constant 0 : i32
    %c0_i32_1 = arith.constant 0 : i32
    return %arg0, %c0_i32, %c0_i32_0 : i32, i32, i32
  }
  func.func @transform_1(%arg0: i32, %arg1: i32, %arg2: i32) -> (i32, i32, i32, i32) {
    %c1_i32 = arith.constant 1 : i32
    %0 = arith.subi %c1_i32, %arg1 : i32
    %1 = arith.muli %arg2, %0 : i32
    %c0_i32 = arith.constant 0 : i32
    %c0_i32_0 = arith.constant 0 : i32
    %c0_i32_1 = arith.constant 0 : i32
    return %arg0, %1, %c0_i32, %c0_i32_0 : i32, i32, i32, i32
  }
  func.func @transform_2(%arg0: i32, %arg1: i32, %arg2: i32) -> (i32, i32, i32, i32, i32) {
    %c1_i32 = arith.constant 1 : i32
    %0 = arith.subi %c1_i32, %arg1 : i32
    %1 = arith.muli %arg2, %0 : i32
    %c0_i32 = arith.constant 0 : i32
    %c0_i32_0 = arith.constant 0 : i32
    %c0_i32_1 = arith.constant 0 : i32
    %c0_i32_2 = arith.constant 0 : i32
    return %arg0, %1, %c0_i32, %c0_i32_0, %c0_i32_1 : i32, i32, i32, i32, i32
  }
  func.func @transform_3(%arg0: i32, %arg1: i32, %arg2: i32) -> (i32, i32) {
    %c0_i32 = arith.constant 0 : i32
    %c0_i32_0 = arith.constant 0 : i32
    %c0_i32_1 = arith.constant 0 : i32
    return %c0_i32, %c0_i32_0 : i32, i32
  }
  func.func @transform_4(%arg0: i32, %arg1: i32, %arg2: i32) -> (i32, i32) {
    %c0_i32 = arith.constant 0 : i32
    %c0_i32_0 = arith.constant 0 : i32
    %c0_i32_1 = arith.constant 0 : i32
    return %c0_i32, %c0_i32_0 : i32, i32
  }
  func.func @transform_5(%arg0: i32, %arg1: i32, %arg2: i32) -> (i32, i32, i32, i32) {
    %0 = arith.muli %arg2, %arg1 : i32
    %c0_i32 = arith.constant 0 : i32
    %c0_i32_0 = arith.constant 0 : i32
    %c0_i32_1 = arith.constant 0 : i32
    return %arg0, %0, %c0_i32, %c0_i32_0 : i32, i32, i32, i32
  }
}

</mosaic_0001>

<llo_original>
// kernel: tpu_custom_call.1
$region0: #{tpu_custom_call.1}
  #allocation0 [shape = 'u32[]', space=smem, size = 0x4, offset = 0x4, fixed_abs, tag = 'smem constant byte address 0x4 - core index']
  #allocation1 [shape = 'u32[144,128]{1,0:T(1,128)}', space=vmem, size = 0x12000, scoped, tag = 'internal scratch']
  #allocation2 [shape = 'f32[4,8,16]{2,1,0:T(8,128)}', space=vmem, size = 0x4000, scoped, tag = 'scratch operand']
  #allocation3 [shape = 'f32[8,1]{1,0:T(8,128)}', space=vmem, size = 0x1000, scoped, tag = 'scratch operand']
  #allocation4 [shape = 'f32[8,1]{1,0:T(8,128)}', space=vmem, size = 0x1000, scoped, tag = 'scratch operand']
  %s0 = inlined_call_operand.hbm [shape: s32[2,8,16], index: 0, kind: input, shape index: {}]
  %s1 = inlined_call_operand.vmem [shape: bf16[2,4,8,16], index: 1, kind: input, shape index: {}]
  %s2 = inlined_call_operand.hbm [shape: bf16[2,4,3,8,16], index: 2, kind: input, shape index: {}]
  %s3 = inlined_call_operand.vmem [shape: bf16[24,8], index: 3, kind: input, shape index: {}]
  %s4 = inlined_call_operand.vmem [shape: bf16[32,8], index: 4, kind: input, shape index: {}]
  %s5 = inlined_call_operand.vmem [shape: f32[2,4,32,16], index: 5, kind: output, shape index: {}]
  %s6 = sld [smem:[#allocation0]]
  $region73: #{tpu_custom_call.1} parent=0
    _
  %s8 = ssub.s32 1, %s6
  %s9 = scalar_select 0, %s8, %s6
  $region1: #{tpu_custom_call.1} parent=0
    #allocation5 [shape = 'u8[8192]{0}', space=vmem, size = 0x2000, scoped, tag = 'input window, operand 0']
    #allocation6 [shape = 's32[2]{0}', space=sflag, size = 0x8, scoped, tag = 'scoped memory for tpu_custom_call.1']
    #allocation7 [shape = 'u8[12288]{0}', space=vmem, size = 0x3000, scoped, tag = 'input window, operand 2']
    #allocation8 [shape = 's32[2]{0}', space=sflag, size = 0x8, scoped, tag = 'scoped memory for tpu_custom_call.1']
    %10 = vsyncpa [#allocation6], 0
    %s11 = scalar_lea.sflag [#allocation6], 1
    %12 = vsyncpa %s11, 0
    %13 = vsyncpa [#allocation8], 0
    %s14 = scalar_lea.sflag [#allocation8], 1
    %15 = vsyncpa %s14, 0
    loop: start=0, step=1, limit=18
    $region2: #{tpu_custom_call.1} parent=1 // loop_pre_header
      _
    $region3: #{tpu_custom_call.1} parent=1 // loop_header
      %s17 = sphi 0, %s21
      %p18 = scmp.ge.s32.totalorder %s17, 18
      %s24 = sphi 0, %s43
      %s25 = sphi 0, %s39
      %s26 = sphi 0, %s35
      %s27 = sphi 0, %s24
      %s28 = sphi 0, %s25
      %s29 = sphi 0, %s26
      %s30 = sphi 0, %s27
      %s31 = sphi 0, %s28
      %s32 = sphi 0, %s29
      %s46 = sphi 0, %s48
      %s49 = sphi 0, %s46
      %s50 = sphi 0, %s49
      %s66 = sphi 0, %s50
      %s78 = sphi 0, %s80
      %s81 = sphi 0, %s78
      %s82 = sphi 0, %s81
      %s98 = sphi 0, %s82
      %s110 = sphi 0, %s112
      %s113 = sphi 0, %s110
      %s114 = sphi 0, %s113
      %s130 = sphi 0, %s114
      %s134 = sphi 0, %s134
      %s136 = sphi 0, %s134
      %s137 = sphi 0, %s136
      %s151 = sphi 0, %s137
      %s155 = sphi 0, %s155
      %s157 = sphi 0, %s155
      %s158 = sphi 0, %s157
      %s172 = sphi 0, %s158
      %s182 = sphi 0, %s184
      %s185 = sphi 0, %s182
      %s186 = sphi 0, %s185
      %s202 = sphi 0, %s186
    $region4: #{tpu_custom_call.1} parent=1 // loop_header_branch
      %20 = sbr.rel (%p18) target = $region8
    $region5: #{tpu_custom_call.1} parent=1 // loop_body
      %s22 = ssub.s32 %s17, 1
      %s23 = ssub.s32 %s17, 2
      %s33 = sadd.s32 1, %s26
      %p34 = scmp.ge.s32.totalorder %s33, 4
      %s35 = scalar_select %p34, 0, %s33
      %s36 = sadd.s32 1, %s25
      %s37 = scalar_select %p34, %s36, %s25
      %p38 = scmp.ge.s32.totalorder %s37, 2
      %s39 = scalar_select %p38, 0, %s37
      %s40 = sadd.s32 1, %s24
      %s41 = scalar_select %p38, %s40, %s24
      %p42 = scmp.ge.s32.totalorder %s41, 2
      %s43 = scalar_select %p42, 0, %s41
      %s44 = ssub.s32 %s24, %s43
      %p45 = scmp.eq.s32.totalorder %s44, 0
      %s47 = sadd.s32 %s46, 1
      %s48 = scalar_select %p45, %s46, %s47
      %p51 = pneg %p45
      %p52 = scmp.eq.s32.totalorder %s17, 15
      %p53 = por %p51, %p52
      %p54 = scmp.ne.s32.totalorder %s46, %s49
      %p55 = scmp.eq.s32.totalorder %s17, 0
      %p56 = por %p54, %p55
      %p57 = scmp.ne.s32.totalorder %s46, %s49
      %p58 = scmp.eq.s32.totalorder %s22, 15
      %p59 = por %p57, %p58
      %p60 = scmp.ne.s32.totalorder %s49, %s50
      %p61 = scmp.eq.s32.totalorder %s22, 0
      %p62 = por %p60, %p61
      %p63 = scmp.ne.s32.totalorder %s49, %s50
      %p64 = scmp.eq.s32.totalorder %s23, 15
      %p65 = por %p63, %p64
      %p67 = scmp.ne.s32.totalorder %s50, %s66
      %p68 = scmp.eq.s32.totalorder %s23, 0
      %p69 = por %p67, %p68
      %s70 = ssub.s32 1, %s25
      %s71 = smul.u32 %s26, %s70
      %s72 = ssub.s32 1, %s39
      %s73 = smul.u32 %s35, %s72
      %s74 = ssub.s32 %s24, %s43
      %s75 = ssub.s32 %s71, %s73
      %s76 = sor.u32 %s74, %s75
      %p77 = scmp.eq.s32.totalorder %s76, 0
      %s79 = sadd.s32 %s78, 1
      %s80 = scalar_select %p77, %s78, %s79
      %p83 = pneg %p77
      %p84 = scmp.eq.s32.totalorder %s17, 15
      %p85 = por %p83, %p84
      %p86 = scmp.ne.s32.totalorder %s78, %s81
      %p87 = scmp.eq.s32.totalorder %s17, 0
      %p88 = por %p86, %p87
      %p89 = scmp.ne.s32.totalorder %s78, %s81
      %p90 = scmp.eq.s32.totalorder %s22, 15
      %p91 = por %p89, %p90
      %p92 = scmp.ne.s32.totalorder %s81, %s82
      %p93 = scmp.eq.s32.totalorder %s22, 0
      %p94 = por %p92, %p93
      %p95 = scmp.ne.s32.totalorder %s81, %s82
      %p96 = scmp.eq.s32.totalorder %s23, 15
      %p97 = por %p95, %p96
      %p99 = scmp.ne.s32.totalorder %s82, %s98
      %p100 = scmp.eq.s32.totalorder %s23, 0
      %p101 = por %p99, %p100
      %s102 = ssub.s32 1, %s25
      %s103 = smul.u32 %s26, %s102
      %s104 = ssub.s32 1, %s39
      %s105 = smul.u32 %s35, %s104
      %s106 = ssub.s32 %s24, %s43
      %s107 = ssub.s32 %s103, %s105
      %s108 = sor.u32 %s106, %s107
      %p109 = scmp.eq.s32.totalorder %s108, 0
      %s111 = sadd.s32 %s110, 1
      %s112 = scalar_select %p109, %s110, %s111
      %p115 = pneg %p109
      %p116 = scmp.eq.s32.totalorder %s17, 15
      %p117 = por %p115, %p116
      %p118 = scmp.ne.s32.totalorder %s110, %s113
      %p119 = scmp.eq.s32.totalorder %s17, 0
      %p120 = por %p118, %p119
      %p121 = scmp.ne.s32.totalorder %s110, %s113
      %p122 = scmp.eq.s32.totalorder %s22, 15
      %p123 = por %p121, %p122
      %p124 = scmp.ne.s32.totalorder %s113, %s114
      %p125 = scmp.eq.s32.totalorder %s22, 0
      %p126 = por %p124, %p125
      %p127 = scmp.ne.s32.totalorder %s113, %s114
      %p128 = scmp.eq.s32.totalorder %s23, 15
      %p129 = por %p127, %p128
      %p131 = scmp.ne.s32.totalorder %s114, %s130
      %p132 = scmp.eq.s32.totalorder %s23, 0
      %p133 = por %p131, %p132
      %s135 = sadd.s32 %s134, 1
      %p138 = scmp.eq.s32.totalorder %s17, 15
      %p139 = scmp.ne.s32.totalorder %s134, %s136
      %p140 = scmp.eq.s32.totalorder %s17, 0
      %p141 = por %p139, %p140
      %p142 = scmp.ne.s32.totalorder %s134, %s136
      %p143 = scmp.eq.s32.totalorder %s22, 15
      %p144 = por %p142, %p143
      %p145 = scmp.ne.s32.totalorder %s136, %s137
      %p146 = scmp.eq.s32.totalorder %s22, 0
      %p147 = por %p145, %p146
      %p148 = scmp.ne.s32.totalorder %s136, %s137
      %p149 = scmp.eq.s32.totalorder %s23, 15
      %p150 = por %p148, %p149
      %p152 = scmp.ne.s32.totalorder %s137, %s151
      %p153 = scmp.eq.s32.totalorder %s23, 0
      %p154 = por %p152, %p153
      %s156 = sadd.s32 %s155, 1
      %p159 = scmp.eq.s32.totalorder %s17, 15
      %p160 = scmp.ne.s32.totalorder %s155, %s157
      %p161 = scmp.eq.s32.totalorder %s17, 0
      %p162 = por %p160, %p161
      %p163 = scmp.ne.s32.totalorder %s155, %s157
      %p164 = scmp.eq.s32.totalorder %s22, 15
      %p165 = por %p163, %p164
      %p166 = scmp.ne.s32.totalorder %s157, %s158
      %p167 = scmp.eq.s32.totalorder %s22, 0
      %p168 = por %p166, %p167
      %p169 = scmp.ne.s32.totalorder %s157, %s158
      %p170 = scmp.eq.s32.totalorder %s23, 15
      %p171 = por %p169, %p170
      %p173 = scmp.ne.s32.totalorder %s158, %s172
      %p174 = scmp.eq.s32.totalorder %s23, 0
      %p175 = por %p173, %p174
      %s176 = smul.u32 %s26, %s25
      %s177 = smul.u32 %s35, %s39
      %s178 = ssub.s32 %s24, %s43
      %s179 = ssub.s32 %s176, %s177
      %s180 = sor.u32 %s178, %s179
      %p181 = scmp.eq.s32.totalorder %s180, 0
      %s183 = sadd.s32 %s182, 1
      %s184 = scalar_select %p181, %s182, %s183
      %p187 = pneg %p181
      %p188 = scmp.eq.s32.totalorder %s17, 15
      %p189 = por %p187, %p188
      %p190 = scmp.ne.s32.totalorder %s182, %s185
      %p191 = scmp.eq.s32.totalorder %s17, 0
      %p192 = por %p190, %p191
      %p193 = scmp.ne.s32.totalorder %s182, %s185
      %p194 = scmp.eq.s32.totalorder %s22, 15
      %p195 = por %p193, %p194
      %p196 = scmp.ne.s32.totalorder %s185, %s186
      %p197 = scmp.eq.s32.totalorder %s22, 0
      %p198 = por %p196, %p197
      %p199 = scmp.ne.s32.totalorder %s185, %s186
      %p200 = scmp.eq.s32.totalorder %s23, 15
      %p201 = por %p199, %p200
      %p203 = scmp.ne.s32.totalorder %s186, %s202
      %p204 = scmp.eq.s32.totalorder %s23, 0
      %p205 = por %p203, %p204
      %p206 = scmp.le.s32.totalorder 1, %s17
      %p207 = scmp.lt.s32.totalorder %s17, 17
      %p208 = pnand %p206, %p207
      %p209 = pneg %p208
      // Predicated region
      $region9: #{tpu_custom_call.1} parent=5 // pred_check
        _
      $region10: #{tpu_custom_call.1} parent=5 // pred_check_branch
        %211 = sbr.rel (%p208) target = $region12
      $region11: #{tpu_custom_call.1} parent=5 // pred_region
        %s212 = ssub.s32 %s17, 1
        // Predicated region
        $region13: #{tpu_custom_call.1} parent=11 // pred_check
          %p213 = pneg %p147
        $region14: #{tpu_custom_call.1} parent=11 // pred_check_branch
          %215 = sbr.rel (%p213) target = $region16
        $region15: #{tpu_custom_call.1} parent=11 // pred_region
          _
        $region16: #{tpu_custom_call.1} parent=11 // pred_fallthru
          _
        // Predicated region
        $region17: #{tpu_custom_call.1} parent=11 // pred_check
          %p216 = pneg %p168
        $region18: #{tpu_custom_call.1} parent=11 // pred_check_branch
          %218 = sbr.rel (%p216) target = $region20
        $region19: #{tpu_custom_call.1} parent=11 // pred_region
          _
        $region20: #{tpu_custom_call.1} parent=11 // pred_fallthru
          _
      $region12: #{tpu_custom_call.1} parent=5 // pred_fallthru
        _
      %p219 = scmp.lt.s32.totalorder %s17, 16
      // Predicated region
      $region21: #{tpu_custom_call.1} parent=5 // pred_check
        %p220 = pneg %p219
      $region22: #{tpu_custom_call.1} parent=5 // pred_check_branch
        %222 = sbr.rel (%p220) target = $region24
      $region23: #{tpu_custom_call.1} parent=5 // pred_region
        // Predicated region
        $region25: #{tpu_custom_call.1} parent=23 // pred_check
          %p223 = pneg %p56
        $region26: #{tpu_custom_call.1} parent=23 // pred_check_branch
          %225 = sbr.rel (%p223) target = $region28
        $region27: #{tpu_custom_call.1} parent=23 // pred_region
          %s226 = sand.u32 %s46, 1
          %s227 = scalar_lea.sflag [#allocation6], %s226
          %s228 = sand.u32 %s46, 1
          %s229 = smul.addr %s228, 8
          %s230 = scalar_lea.vmem [#allocation5], %s229
          %s232 = ssub.s32 128, 128
          %233 = vsyncadd %s227, %s232
          %s234 = smul.addr %s24, 128
          %s235 = scalar_lea.hbm %s0, %s234
          %s237 = sshll.u32 %s230, 4
          %s238 = int_to_ptr.vmem [resolvable:$true] %s237
          %240 = dma.hbm_to_vmem [thread:$0]  %s235, 128, %s238, %s227
        $region28: #{tpu_custom_call.1} parent=23 // pred_fallthru
          _
        // Predicated region
        $region29: #{tpu_custom_call.1} parent=23 // pred_check
          %p241 = pneg %p88
        $region30: #{tpu_custom_call.1} parent=23 // pred_check_branch
          %243 = sbr.rel (%p241) target = $region32
        $region31: #{tpu_custom_call.1} parent=23 // pred_region
          %s244 = ssub.s32 1, %s25
          %s245 = smul.u32 %s26, %s244
          %p246 = scmp.lt.s32.totalorder %s24, 1
          %s247 = scalar_select %p246, %s24, 1
          %p248 = scmp.lt.s32.totalorder %s245, 3
          %s249 = scalar_select %p248, %s245, 3
          %s250 = smul.addr %s247, 4
          %s251 = sadd.s32 %s249, %s250
          %s252 = smul.addr %s251, 4
          %s253 = scalar_lea.vmem %s1, %s252
          %s254 = ssub.s32 1, %s25
          %s255 = smul.u32 %s26, %s254
        $region32: #{tpu_custom_call.1} parent=23 // pred_fallthru
          _
        // Predicated region
        $region33: #{tpu_custom_call.1} parent=23 // pred_check
          %p256 = pneg %p120
        $region34: #{tpu_custom_call.1} parent=23 // pred_check_branch
          %258 = sbr.rel (%p256) target = $region36
        $region35: #{tpu_custom_call.1} parent=23 // pred_region
          %s259 = sand.u32 %s110, 1
          %s260 = scalar_lea.sflag [#allocation8], %s259
          %s261 = sand.u32 %s110, 1
          %s262 = smul.addr %s261, 12
          %s263 = scalar_lea.vmem [#allocation7], %s262
          %s264 = ssub.s32 1, %s25
          %s265 = smul.u32 %s26, %s264
          %s267 = ssub.s32 192, 192
          %268 = vsyncadd %s260, %s267
          %s269 = smul.addr %s265, 3
          %s270 = smul.addr %s24, 12
          %s271 = sadd.s32 %s269, %s270
          %s272 = smul.addr %s271, 64
          %s273 = scalar_lea.hbm %s2, %s272
          %s274 = sshll.u32 %s263, 4
          %s275 = int_to_ptr.vmem [resolvable:$true] %s274
          %280 = dma.hbm_to_vmem [thread:$0]  %s273, 192, %s275, %s260, 64, 64, 4
        $region36: #{tpu_custom_call.1} parent=23 // pred_fallthru
          _
      $region24: #{tpu_custom_call.1} parent=5 // pred_fallthru
        _
      %p281 = scmp.le.s32.totalorder 1, %s17
      %p282 = scmp.lt.s32.totalorder %s17, 17
      %p283 = pnand %p281, %p282
      %p284 = pneg %p283
      // Predicated region
      $region37: #{tpu_custom_call.1} parent=5 // pred_check
        _
      $region38: #{tpu_custom_call.1} parent=5 // pred_check_branch
        %286 = sbr.rel (%p283) target = $region40
      $region39: #{tpu_custom_call.1} parent=5 // pred_region
        %s287 = ssub.s32 %s17, 1
        %s288 = sand.u32 %s49, 1
        %s289 = scalar_lea.sflag [#allocation6], %s288
        %s290 = sand.u32 %s49, 1
        %s291 = smul.addr %s290, 8
        %s292 = scalar_lea.vmem [#allocation5], %s291
        // Predicated region
        $region41: #{tpu_custom_call.1} parent=39 // pred_check
          %p293 = pneg %p62
        $region42: #{tpu_custom_call.1} parent=39 // pred_check_branch
          %295 = sbr.rel (%p293) target = $region44
        $region43: #{tpu_custom_call.1} parent=39 // pred_region
          %296 = dma.done %s289, 128
        $region44: #{tpu_custom_call.1} parent=39 // pred_fallthru
          _
        %s297 = sand.u32 %s113, 1
        %s298 = scalar_lea.sflag [#allocation8], %s297
        %s299 = sand.u32 %s113, 1
        %s300 = smul.addr %s299, 12
        %s301 = scalar_lea.vmem [#allocation7], %s300
        // Predicated region
        $region45: #{tpu_custom_call.1} parent=39 // pred_check
          %p302 = pneg %p126
        $region46: #{tpu_custom_call.1} parent=39 // pred_check_branch
          %304 = sbr.rel (%p302) target = $region48
        $region47: #{tpu_custom_call.1} parent=39 // pred_region
          %305 = dma.done %s298, 192
        $region48: #{tpu_custom_call.1} parent=39 // pred_fallthru
          _
        %s306 = sand.u32 %s49, 1
        %s307 = scalar_lea.sflag [#allocation6], %s306
        %s308 = sand.u32 %s49, 1
        %s309 = smul.addr %s308, 8
        %s310 = scalar_lea.vmem [#allocation5], %s309
        %p311 = pneg %p62
        %p312 = pneg %p59
        %s313 = ssub.s32 1, %s28
        %s314 = smul.u32 %s29, %s313
        %p315 = scmp.lt.s32.totalorder %s27, 1
        %s316 = scalar_select %p315, %s27, 1
        %p317 = scmp.lt.s32.totalorder %s314, 3
        %s318 = scalar_select %p317, %s314, 3
        %s319 = smul.addr %s316, 4
        %s320 = sadd.s32 %s318, %s319
        %s321 = smul.addr %s320, 4
        %s322 = scalar_lea.vmem %s1, %s321
        %p323 = pneg %p94
        %p324 = pneg %p91
        %s325 = sand.u32 %s113, 1
        %s326 = scalar_lea.sflag [#allocation8], %s325
        %s327 = sand.u32 %s113, 1
        %s328 = smul.addr %s327, 12
        %s329 = scalar_lea.vmem [#allocation7], %s328
        %p330 = pneg %p126
        %p331 = pneg %p123
        %p332 = pneg %p147
        %p333 = pneg %p144
        %p334 = pneg %p168
        %p335 = pneg %p165
        %p336 = pneg %p198
        %p337 = pneg %p195
        %s338 = smul.u32 %s29, %s28
        %p339 = scmp.lt.s32.totalorder %s27, 1
        %s340 = scalar_select %p339, %s27, 1
        %p341 = scmp.lt.s32.totalorder %s338, 3
        %s342 = scalar_select %p341, %s338, 3
        %s343 = smul.addr %s342, 4
        %s344 = smul.addr %s340, 16
        %s345 = sadd.s32 %s343, %s344
        %s346 = smul.addr %s345, 8
        %s347 = scalar_lea.vmem %s5, %s346
        %s348 = ssub.s32 1, %s28
        %s349 = smul.u32 %s29, %s348
        %p350 = scmp.lt.s32.totalorder %s27, 1
        %s351 = scalar_select %p350, %s27, 1
        %p352 = scmp.lt.s32.totalorder %s349, 3
        %s353 = scalar_select %p352, %s349, 3
        %s354 = smul.addr %s351, 4
        %s355 = sadd.s32 %s353, %s354
        %s356 = smul.addr %s355, 4
        %s357 = scalar_lea.vmem %s1, %s356
        %s358 = ssub.s32 1, %s28
        %s359 = smul.u32 %s29, %s358
        %s360 = ssub.s32 1, %s28
        %s361 = smul.u32 %s29, %s360
        %s362 = smul.u32 %s29, %s28
        %p363 = scmp.lt.s32.totalorder %s27, 1
        %s364 = scalar_select %p363, %s27, 1
        %p365 = scmp.lt.s32.totalorder %s362, 3
        %s366 = scalar_select %p365, %s362, 3
        %s367 = smul.addr %s366, 4
        %s368 = smul.addr %s364, 16
        %s369 = sadd.s32 %s367, %s368
        %s370 = smul.addr %s369, 8
        %s371 = scalar_lea.vmem %s5, %s370
        %s372 = smul.u32 %s29, %s28
        %p374 = scmp.eq.s32.totalorder %s28, 0
        // Predicated region
        $region49: #{tpu_custom_call.1} parent=39 // pred_check
          %p375 = pneg %p374
        $region50: #{tpu_custom_call.1} parent=39 // pred_check_branch
          %377 = sbr.rel (%p375) target = $region52
        $region51: #{tpu_custom_call.1} parent=39 // pred_region
          %p378 = scmp.eq.s32.totalorder %s29, 0
          // Predicated region
          $region53: #{tpu_custom_call.1} parent=51 // pred_check
            %p379 = pneg %p378
          $region54: #{tpu_custom_call.1} parent=51 // pred_check_branch
            %381 = sbr.rel (%p379) target = $region56
          $region55: #{tpu_custom_call.1} parent=51 // pred_region
            %vm382 = vcmask 7168
            %383 = vst.msk [vmem:[#allocation3] sm:$0xff] %vm382, 0.0
            %384 = vst.msk [vmem:[#allocation4] sm:$0xff] %vm382, 0.0
          $region56: #{tpu_custom_call.1} parent=51 // pred_fallthru
            _
          %v385 = vld [vmem:[%s3] sm:$0xf]
          %v386 = vld [vmem:[%s3 + $0x4] sm:$0xf]
          %v387 = vld [vmem:[%s3 + $0x8] sm:$0xf]
          %v388 = vld [vmem:[%s357] sm:$0xf]
          %v392 = vunpack.c.l.b16 %v385
          %v393 = vunpack.c.l.b16 %v386
          %v394 = vunpack.c.l.b16 %v387
          %v395 = vpack.c.b16 %v393, %v392
          %v396 = vpack.c.b16 %v394, %v394
          %vm397 = vcmask 64512
          %v399 = vsel %vm397, %v395, 0
          %v402 = vsel %vm397, %v396, 0
          %vm404 = vcmask 1043456
          %v406 = vsel %vm404, %v388, 0
          %408 = vmatprep.subr.bf16.mxu0 0
          %409 = vmatpush1.bf16.msra.mxu0 %v406
          %410 = vmatprep.subr.bf16.mxu0 0
          %411 = vmatpush1.bf16.msra.mxu0 0
          %412 = vmatprep.subr.bf16.mxu0 0
          %413 = vmatpush1.bf16.msra.mxu0 0
          %414 = vmatprep.subr.bf16.mxu0 0
          %415 = vmatpush1.bf16.msra.mxu0 0
          %416 = vmatprep.subr.bf16.mxu0 0
          %417 = vmatpush1.bf16.msra.mxu0 0
          %418 = vmatprep.subr.bf16.mxu0 0
          %419 = vmatpush1.bf16.msra.mxu0 0
          %420 = vmatprep.subr.bf16.mxu0 0
          %421 = vmatpush1.bf16.msra.mxu0 0
          %422 = vmatprep.subr.bf16.mxu0 0
          %423 = vmatpush1.bf16.msra.mxu0 0
          %424 = vmatprep.subr.bf16.mxu0 0
          %425 = vmatpush1.bf16.msra.mxu0 0
          %426 = vmatprep.subr.bf16.mxu0 0
          %427 = vmatpush1.bf16.msra.mxu0 0
          %428 = vmatprep.subr.bf16.mxu0 0
          %429 = vmatpush1.bf16.msra.mxu0 0
          %430 = vmatprep.subr.bf16.mxu0 0
          %431 = vmatpush1.bf16.msra.mxu0 0
          %432 = vmatprep.subr.bf16.mxu0 0
          %433 = vmatpush1.bf16.msra.mxu0 0
          %434 = vmatprep.subr.bf16.mxu0 0
          %435 = vmatpush1.bf16.msra.mxu0 0
          %436 = vmatprep.subr.bf16.mxu0 0
          %437 = vmatpush1.bf16.msra.mxu0 0
          %438 = vmatprep.subr.bf16.mxu0 0
          %439 = vmatpush1.bf16.msra.mxu0 0
          %440 = vmatprep.mubr.bf16.mxu0 0
          %441 = vmatmul.mubr.bf16.gmra.mrb[0].mxu0 %v399
          %v442 = vpop.f32.mrb[0].mxu0
          %v443 = vadd.f32 0.0, %v442
          %v444 = vpop.f32.mrb[0].mxu0
          %v445 = vpop.f32.mrb[0].mxu0
          %v446 = vadd.f32 0.0, %v445
          %v447 = vpop.f32.mrb[0].mxu0
          %448 = vmatprep.mubr.bf16.mxu0 0
          %449 = vmatmul.mubr.bf16.gmra.mrb[0].mxu0 %v402
          %v450 = vpop.f32.mrb[0].mxu0
          %v451 = vadd.f32 0.0, %v450
          %v452 = vpop.f32.mrb[0].mxu0
          %v453 = vpop.f32.mrb[0].mxu0
          %v454 = vpop.f32.mrb[0].mxu0
          %455 = vdwg.mxu0
          %v456 = vlaneseq
          %v457 = vshrl.u32 %v456, 7
          %v458 = vadd.s32 %v457, 8
          %v459 = vld [vmem:[%s301] sm:$0xf]
          %v460 = vld [vmem:[%s301 + $0x4] sm:$0xf]
          %v461 = vld [vmem:[%s301 + $0x8] sm:$0xf]
          %v462 = vunpack.c.l.bf16 %v459
          %v463 = vunpack.c.l.bf16 %v460
          %v464 = vunpack.c.l.bf16 %v461
          %v465 = vld [vmem:[%s292] sm:$0x1]
          %v466 = vlaneseq
          %v467 = vshrl.u32 %v466, 7
          %v468 = vsub.s32 0, %v467
          %v469 = vrot.slane %v465, %v468
          %vm470 = vcmp.eq.s32.totalorder %v469, %v457
          %vm471 = vcmp.eq.s32.totalorder %v469, %v458
          %v472 = vlaneseq
          %v473 = vshrl.u32 %v472, 7
          %v474 = vsub.s32 0, %v473
          %v475 = vrot.slane %v462, %v474
          %v476 = vsel %vm470, %v475, 0.0
          %v477 = vsel %vm471, %v475, 0.0
          %v478 = vadd.f32 %v476, 0.0
          %v479 = vadd.f32 %v477, 0.0
          %v480 = vld [vmem:[%s292 + $0x1] sm:$0x1]
          %v481 = vlaneseq
          %v482 = vshrl.u32 %v481, 7
          %v483 = vsub.s32 0, %v482
          %v484 = vrot.slane %v480, %v483
          %vm485 = vcmp.eq.s32.totalorder %v484, %v457
          %vm486 = vcmp.eq.s32.totalorder %v484, %v458
          %v487 = vlaneseq
          %v488 = vshrl.u32 %v487, 7
          %v489 = vsub.s32 1, %v488
          %v490 = vrot.slane %v462, %v489
          %v491 = vsel %vm485, %v490, 0.0
          %v492 = vsel %vm486, %v490, 0.0
          %v493 = vadd.f32 %v478, %v491
          %v494 = vadd.f32 %v479, %v492
          %v495 = vld [vmem:[%s292 + $0x2] sm:$0x1]
          %v496 = vlaneseq
          %v497 = vshrl.u32 %v496, 7
          %v498 = vsub.s32 0, %v497
          %v499 = vrot.slane %v495, %v498
          %vm500 = vcmp.eq.s32.totalorder %v499, %v457
          %vm501 = vcmp.eq.s32.totalorder %v499, %v458
          %v502 = vlaneseq
          %v503 = vshrl.u32 %v502, 7
          %v504 = vsub.s32 2, %v503
          %v505 = vrot.slane %v462, %v504
          %v506 = vsel %vm500, %v505, 0.0
          %v507 = vsel %vm501, %v505, 0.0
          %v508 = vadd.f32 %v493, %v506
          %v509 = vadd.f32 %v494, %v507
          %v510 = vld [vmem:[%s292 + $0x3] sm:$0x1]
          %v511 = vlaneseq
          %v512 = vshrl.u32 %v511, 7
          %v513 = vsub.s32 0, %v512
          %v514 = vrot.slane %v510, %v513
          %vm515 = vcmp.eq.s32.totalorder %v514, %v457
          %vm516 = vcmp.eq.s32.totalorder %v514, %v458
          %v517 = vlaneseq
          %v518 = vshrl.u32 %v517, 7
          %v519 = vsub.s32 3, %v518
          %v520 = vrot.slane %v462, %v519
          %v521 = vsel %vm515, %v520, 0.0
          %v522 = vsel %vm516, %v520, 0.0
          %v523 = vadd.f32 %v508, %v521
          %v524 = vadd.f32 %v509, %v522
          %v525 = vld [vmem:[%s292 + $0x4] sm:$0x1]
          %v526 = vlaneseq
          %v527 = vshrl.u32 %v526, 7
          %v528 = vsub.s32 0, %v527
          %v529 = vrot.slane %v525, %v528
          %vm530 = vcmp.eq.s32.totalorder %v529, %v457
          %vm531 = vcmp.eq.s32.totalorder %v529, %v458
          %v532 = vlaneseq
          %v533 = vshrl.u32 %v532, 7
          %v534 = vsub.s32 4, %v533
          %v535 = vrot.slane %v462, %v534
          %v536 = vsel %vm530, %v535, 0.0
          %v537 = vsel %vm531, %v535, 0.0
          %v538 = vadd.f32 %v523, %v536
          %v539 = vadd.f32 %v524, %v537
          %v540 = vld [vmem:[%s292 + $0x5] sm:$0x1]
          %v541 = vlaneseq
          %v542 = vshrl.u32 %v541, 7
          %v543 = vsub.s32 0, %v542
          %v544 = vrot.slane %v540, %v543
          %vm545 = vcmp.eq.s32.totalorder %v544, %v457
          %vm546 = vcmp.eq.s32.totalorder %v544, %v458
          %v547 = vlaneseq
          %v548 = vshrl.u32 %v547, 7
          %v549 = vsub.s32 5, %v548
          %v550 = vrot.slane %v462, %v549
          %v551 = vsel %vm545, %v550, 0.0
          %v552 = vsel %vm546, %v550, 0.0
          %v553 = vadd.f32 %v538, %v551
          %v554 = vadd.f32 %v539, %v552
          %v555 = vld [vmem:[%s292 + $0x6] sm:$0x1]
          %v556 = vlaneseq
          %v557 = vshrl.u32 %v556, 7
          %v558 = vsub.s32 0, %v557
          %v559 = vrot.slane %v555, %v558
          %vm560 = vcmp.eq.s32.totalorder %v559, %v457
          %vm561 = vcmp.eq.s32.totalorder %v559, %v458
          %v562 = vlaneseq
          %v563 = vshrl.u32 %v562, 7
          %v564 = vsub.s32 6, %v563
          %v565 = vrot.slane %v462, %v564
          %v566 = vsel %vm560, %v565, 0.0
          %v567 = vsel %vm561, %v565, 0.0
          %v568 = vadd.f32 %v553, %v566
          %v569 = vadd.f32 %v554, %v567
          %v570 = vld [vmem:[%s292 + $0x7] sm:$0x1]
          %v571 = vlaneseq
          %v572 = vshrl.u32 %v571, 7
          %v573 = vsub.s32 0, %v572
          %v574 = vrot.slane %v570, %v573
          %vm575 = vcmp.eq.s32.totalorder %v574, %v457
          %vm576 = vcmp.eq.s32.totalorder %v574, %v458
          %v577 = vlaneseq
          %v578 = vshrl.u32 %v577, 7
          %v579 = vsub.s32 7, %v578
          %v580 = vrot.slane %v462, %v579
          %v581 = vsel %vm575, %v580, 0.0
          %v582 = vsel %vm576, %v580, 0.0
          %v583 = vadd.f32 %v568, %v581
          %v584 = vadd.f32 %v569, %v582
          %v585 = vlaneseq
          %v586 = vshrl.u32 %v585, 7
          %v587 = vsub.s32 0, %v586
          %v588 = vrot.slane %v463, %v587
          %v589 = vsel %vm470, %v588, 0.0
          %v590 = vsel %vm471, %v588, 0.0
          %v591 = vadd.f32 %v589, 0.0
          %v592 = vadd.f32 %v590, 0.0
          %v593 = vlaneseq
          %v594 = vshrl.u32 %v593, 7
          %v595 = vsub.s32 1, %v594
          %v596 = vrot.slane %v463, %v595
          %v597 = vsel %vm485, %v596, 0.0
          %v598 = vsel %vm486, %v596, 0.0
          %v599 = vadd.f32 %v591, %v597
          %v600 = vadd.f32 %v592, %v598
          %v601 = vlaneseq
          %v602 = vshrl.u32 %v601, 7
          %v603 = vsub.s32 2, %v602
          %v604 = vrot.slane %v463, %v603
          %v605 = vsel %vm500, %v604, 0.0
          %v606 = vsel %vm501, %v604, 0.0
          %v607 = vadd.f32 %v599, %v605
          %v608 = vadd.f32 %v600, %v606
          %v609 = vlaneseq
          %v610 = vshrl.u32 %v609, 7
          %v611 = vsub.s32 3, %v610
          %v612 = vrot.slane %v463, %v611
          %v613 = vsel %vm515, %v612, 0.0
          %v614 = vsel %vm516, %v612, 0.0
          %v615 = vadd.f32 %v607, %v613
          %v616 = vadd.f32 %v608, %v614
          %v617 = vlaneseq
          %v618 = vshrl.u32 %v617, 7
          %v619 = vsub.s32 4, %v618
          %v620 = vrot.slane %v463, %v619
          %v621 = vsel %vm530, %v620, 0.0
          %v622 = vsel %vm531, %v620, 0.0
          %v623 = vadd.f32 %v615, %v621
          %v624 = vadd.f32 %v616, %v622
          %v625 = vlaneseq
          %v626 = vshrl.u32 %v625, 7
          %v627 = vsub.s32 5, %v626
          %v628 = vrot.slane %v463, %v627
          %v629 = vsel %vm545, %v628, 0.0
          %v630 = vsel %vm546, %v628, 0.0
          %v631 = vadd.f32 %v623, %v629
          %v632 = vadd.f32 %v624, %v630
          %v633 = vlaneseq
          %v634 = vshrl.u32 %v633, 7
          %v635 = vsub.s32 6, %v634
          %v636 = vrot.slane %v463, %v635
          %v637 = vsel %vm560, %v636, 0.0
          %v638 = vsel %vm561, %v636, 0.0
          %v639 = vadd.f32 %v631, %v637
          %v640 = vadd.f32 %v632, %v638
          %v641 = vlaneseq
          %v642 = vshrl.u32 %v641, 7
          %v643 = vsub.s32 7, %v642
          %v644 = vrot.slane %v463, %v643
          %v645 = vsel %vm575, %v644, 0.0
          %v646 = vsel %vm576, %v644, 0.0
          %v647 = vadd.f32 %v639, %v645
          %v648 = vadd.f32 %v640, %v646
          %v649 = vlaneseq
          %v650 = vshrl.u32 %v649, 7
          %v651 = vsub.s32 0, %v650
          %v652 = vrot.slane %v464, %v651
          %v653 = vsel %vm470, %v652, 0.0
          %v654 = vsel %vm471, %v652, 0.0
          %v655 = vadd.f32 %v653, 0.0
          %v656 = vadd.f32 %v654, 0.0
          %v657 = vlaneseq
          %v658 = vshrl.u32 %v657, 7
          %v659 = vsub.s32 1, %v658
          %v660 = vrot.slane %v464, %v659
          %v661 = vsel %vm485, %v660, 0.0
          %v662 = vsel %vm486, %v660, 0.0
          %v663 = vadd.f32 %v655, %v661
          %v664 = vadd.f32 %v656, %v662
          %v665 = vlaneseq
          %v666 = vshrl.u32 %v665, 7
          %v667 = vsub.s32 2, %v666
          %v668 = vrot.slane %v464, %v667
          %v669 = vsel %vm500, %v668, 0.0
          %v670 = vsel %vm501, %v668, 0.0
          %v671 = vadd.f32 %v663, %v669
          %v672 = vadd.f32 %v664, %v670
          %v673 = vlaneseq
          %v674 = vshrl.u32 %v673, 7
          %v675 = vsub.s32 3, %v674
          %v676 = vrot.slane %v464, %v675
          %v677 = vsel %vm515, %v676, 0.0
          %v678 = vsel %vm516, %v676, 0.0
          %v679 = vadd.f32 %v671, %v677
          %v680 = vadd.f32 %v672, %v678
          %v681 = vlaneseq
          %v682 = vshrl.u32 %v681, 7
          %v683 = vsub.s32 4, %v682
          %v684 = vrot.slane %v464, %v683
          %v685 = vsel %vm530, %v684, 0.0
          %v686 = vsel %vm531, %v684, 0.0
          %v687 = vadd.f32 %v679, %v685
          %v688 = vadd.f32 %v680, %v686
          %v689 = vlaneseq
          %v690 = vshrl.u32 %v689, 7
          %v691 = vsub.s32 5, %v690
          %v692 = vrot.slane %v464, %v691
          %v693 = vsel %vm545, %v692, 0.0
          %v694 = vsel %vm546, %v692, 0.0
          %v695 = vadd.f32 %v687, %v693
          %v696 = vadd.f32 %v688, %v694
          %v697 = vlaneseq
          %v698 = vshrl.u32 %v697, 7
          %v699 = vsub.s32 6, %v698
          %v700 = vrot.slane %v464, %v699
          %v701 = vsel %vm560, %v700, 0.0
          %v702 = vsel %vm561, %v700, 0.0
          %v703 = vadd.f32 %v695, %v701
          %v704 = vadd.f32 %v696, %v702
          %v705 = vlaneseq
          %v706 = vshrl.u32 %v705, 7
          %v707 = vsub.s32 7, %v706
          %v708 = vrot.slane %v464, %v707
          %v709 = vsel %vm575, %v708, 0.0
          %v710 = vsel %vm576, %v708, 0.0
          %v711 = vadd.f32 %v703, %v709
          %v712 = vadd.f32 %v704, %v710
          %714 = vrot.lane.b32.xlu0 %v446, 16
          %v715 = vpop.permute.xlu0 %714
          %718 = vrot.lane.b32.xlu0 %v451, 32
          %v719 = vpop.permute.xlu0 %718
          %vm721 = vcmask 130048
          %v722 = vsel %vm721, %v443, %v715
          %vm723 = vcmask 261120
          %v724 = vsel %vm723, %v722, %v719
          %v725 = vpack.c.bf16 %v724, %v724
          %v726 = vpack.c.bf16 %v584, %v583
          %v727 = vpack.c.bf16 %v648, %v647
          %v728 = vpack.c.bf16 %v712, %v711
          %vm729 = vcmask 392192
          %v731 = vsel %vm729, %v725, 0
          %733 = vmatprep.subr.bf16.mxu0 0
          %734 = vmatpush1.bf16.msra.mxu0 %v726
          %735 = vmatprep.subr.bf16.mxu0 0
          %736 = vmatpush1.bf16.msra.mxu0 %v727
          %737 = vmatprep.subr.bf16.mxu0 0
          %738 = vmatpush1.bf16.msra.mxu0 %v728
          %739 = vmatprep.subr.bf16.mxu0 0
          %740 = vmatpush1.bf16.msra.mxu0 0
          %741 = vmatprep.subr.bf16.mxu0 0
          %742 = vmatpush1.bf16.msra.mxu0 0
          %743 = vmatprep.subr.bf16.mxu0 0
          %744 = vmatpush1.bf16.msra.mxu0 0
          %745 = vmatprep.subr.bf16.mxu0 0
          %746 = vmatpush1.bf16.msra.mxu0 0
          %747 = vmatprep.subr.bf16.mxu0 0
          %748 = vmatpush1.bf16.msra.mxu0 0
          %749 = vmatprep.subr.bf16.mxu0 0
          %750 = vmatpush1.bf16.msra.mxu0 0
          %751 = vmatprep.subr.bf16.mxu0 0
          %752 = vmatpush1.bf16.msra.mxu0 0
          %753 = vmatprep.subr.bf16.mxu0 0
          %754 = vmatpush1.bf16.msra.mxu0 0
          %755 = vmatprep.subr.bf16.mxu0 0
          %756 = vmatpush1.bf16.msra.mxu0 0
          %757 = vmatprep.subr.bf16.mxu0 0
          %758 = vmatpush1.bf16.msra.mxu0 0
          %759 = vmatprep.subr.bf16.mxu0 0
          %760 = vmatpush1.bf16.msra.mxu0 0
          %761 = vmatprep.subr.bf16.mxu0 0
          %762 = vmatpush1.bf16.msra.mxu0 0
          %763 = vmatprep.subr.bf16.mxu0 0
          %764 = vmatpush1.bf16.msra.mxu0 0
          %765 = vmatprep.mubr.bf16.mxu0 0
          %766 = vmatmul.mubr.bf16.gmra.mrb[0].mxu0 %v731
          %v767 = vpop.f32.mrb[0].mxu0
          %v768 = vadd.f32 0.0, %v767
          %v769 = vpop.f32.mrb[0].mxu0
          %v770 = vpop.f32.mrb[0].mxu0
          %v771 = vpop.f32.mrb[0].mxu0
          %772 = vdwg.mxu0
          %s773 = smul.u32 %s29, 8
          %s774 = scalar_lea.vmem [#allocation2], %s773
          %775 = vst.msk [vmem:[%s774] sm:$0xff] %vm721, %v768
          %v776 = vld [vmem:[#allocation3] sm:$0xff]
          %v777 = vsel %vm721, %v768, 0.0
          %778 = vadd.xlane.f32.xlu0 %v777
          %v779 = vpop.xlane.xlu0 %778
          %v780 = vadd.f32 %v776, %v779
          %vm781 = vcmask 7168
          %782 = vst.msk [vmem:[#allocation3] sm:$0xff] %vm781, %v780
          %v783 = vld [vmem:[#allocation4] sm:$0xff]
          %v784 = vmul.f32 %v768, %v768
          %v785 = vsel %vm721, %v784, 0.0
          %786 = vadd.xlane.f32.xlu0 %v785
          %v787 = vpop.xlane.xlu0 %786
          %v788 = vadd.f32 %v783, %v787
          %789 = vst.msk [vmem:[#allocation4] sm:$0xff] %vm781, %v788
        $region52: #{tpu_custom_call.1} parent=39 // pred_fallthru
          _
        %p790 = scmp.eq.s32.totalorder %s28, 1
        // Predicated region
        $region57: #{tpu_custom_call.1} parent=39 // pred_check
          %p791 = pneg %p790
        $region58: #{tpu_custom_call.1} parent=39 // pred_check_branch
          %793 = sbr.rel (%p791) target = $region60
        $region59: #{tpu_custom_call.1} parent=39 // pred_region
          %v794 = vld [vmem:[#allocation3] sm:$0xff]
          %v795 = vmul.f32 %v794, 0.015625
          %v796 = vld [vmem:[#allocation4] sm:$0xff]
          %v797 = vmul.f32 %v796, 0.015625
          %v798 = vmul.f32 %v795, %v795
          %v799 = vsub.f32 %v797, %v798
          %v800 = vadd.f32 %v799, 1e-05
          %v801 = vrsqrt.pop %v800
          %s802 = smul.u32 %s29, 8
          %s803 = scalar_lea.vmem [#allocation2], %s802
          %v804 = vld [vmem:[%s803] sm:$0xff]
          %806 = vset.pattern.permute.xlu0 0
          %807 = vperm.xlu0 %806, %v795
          %v808 = vpop.permute.xlu0 %807
          %v810 = vsub.f32 %v804, %v808
          %812 = vset.pattern.permute.xlu0 0
          %813 = vperm.xlu0 %812, %v801
          %v814 = vpop.permute.xlu0 %813
          %v816 = vmul.f32 %v810, %v814
          %v817 = vmax.f32 %v816, 0.0
          %v818 = vld [vmem:[%s4] sm:$0xf]
          %v819 = vld [vmem:[%s4 + $0x4] sm:$0xf]
          %v820 = vld [vmem:[%s4 + $0x8] sm:$0xf]
          %v821 = vld [vmem:[%s4 + $0xc] sm:$0xf]
          %v822 = vpack.c.bf16 %v817, %v817
          %v827 = vunpack.c.l.b16 %v818
          %v828 = vunpack.c.l.b16 %v819
          %v829 = vunpack.c.l.b16 %v820
          %v830 = vunpack.c.l.b16 %v821
          %v831 = vpack.c.b16 %v828, %v827
          %v832 = vpack.c.b16 %v830, %v829
          %vm833 = vcmask 64512
          %v835 = vsel %vm833, %v831, 0
          %v838 = vsel %vm833, %v832, 0
          %vm840 = vcmask 1043456
          %v842 = vsel %vm840, %v822, 0
          %844 = vmatprep.subr.bf16.mxu0 0
          %845 = vmatpush1.bf16.msra.mxu0 %v842
          %846 = vmatprep.subr.bf16.mxu0 0
          %847 = vmatpush1.bf16.msra.mxu0 0
          %848 = vmatprep.subr.bf16.mxu0 0
          %849 = vmatpush1.bf16.msra.mxu0 0
          %850 = vmatprep.subr.bf16.mxu0 0
          %851 = vmatpush1.bf16.msra.mxu0 0
          %852 = vmatprep.subr.bf16.mxu0 0
          %853 = vmatpush1.bf16.msra.mxu0 0
          %854 = vmatprep.subr.bf16.mxu0 0
          %855 = vmatpush1.bf16.msra.mxu0 0
          %856 = vmatprep.subr.bf16.mxu0 0
          %857 = vmatpush1.bf16.msra.mxu0 0
          %858 = vmatprep.subr.bf16.mxu0 0
          %859 = vmatpush1.bf16.msra.mxu0 0
          %860 = vmatprep.subr.bf16.mxu0 0
          %861 = vmatpush1.bf16.msra.mxu0 0
          %862 = vmatprep.subr.bf16.mxu0 0
          %863 = vmatpush1.bf16.msra.mxu0 0
          %864 = vmatprep.subr.bf16.mxu0 0
          %865 = vmatpush1.bf16.msra.mxu0 0
          %866 = vmatprep.subr.bf16.mxu0 0
          %867 = vmatpush1.bf16.msra.mxu0 0
          %868 = vmatprep.subr.bf16.mxu0 0
          %869 = vmatpush1.bf16.msra.mxu0 0
          %870 = vmatprep.subr.bf16.mxu0 0
          %871 = vmatpush1.bf16.msra.mxu0 0
          %872 = vmatprep.subr.bf16.mxu0 0
          %873 = vmatpush1.bf16.msra.mxu0 0
          %874 = vmatprep.subr.bf16.mxu0 0
          %875 = vmatpush1.bf16.msra.mxu0 0
          %876 = vmatprep.mubr.bf16.mxu0 0
          %877 = vmatmul.mubr.bf16.gmra.mrb[0].mxu0 %v835
          %v878 = vpop.f32.mrb[0].mxu0
          %v879 = vadd.f32 0.0, %v878
          %v880 = vpop.f32.mrb[0].mxu0
          %v881 = vpop.f32.mrb[0].mxu0
          %v882 = vadd.f32 0.0, %v881
          %v883 = vpop.f32.mrb[0].mxu0
          %884 = vmatprep.mubr.bf16.mxu0 0
          %885 = vmatmul.mubr.bf16.gmra.mrb[0].mxu0 %v838
          %v886 = vpop.f32.mrb[0].mxu0
          %v887 = vadd.f32 0.0, %v886
          %v888 = vpop.f32.mrb[0].mxu0
          %v889 = vpop.f32.mrb[0].mxu0
          %v890 = vadd.f32 0.0, %v889
          %v891 = vpop.f32.mrb[0].mxu0
          %892 = vdwg.mxu0
          %vm893 = vcmask 130048
          %894 = vst.msk [vmem:[%s371] sm:$0xff] %vm893, %v879
          %895 = vst.msk [vmem:[%s371 + $0x8] sm:$0xff] %vm893, %v882
          %896 = vst.msk [vmem:[%s371 + $0x10] sm:$0xff] %vm893, %v887
          %897 = vst.msk [vmem:[%s371 + $0x18] sm:$0xff] %vm893, %v890
        $region60: #{tpu_custom_call.1} parent=39 // pred_fallthru
          _
        %s898 = smul.u32 %s29, %s28
        %p899 = scmp.lt.s32.totalorder %s27, 1
        %s900 = scalar_select %p899, %s27, 1
        %p901 = scmp.lt.s32.totalorder %s898, 3
        %s902 = scalar_select %p901, %s898, 3
        %s903 = smul.addr %s902, 4
        %s904 = smul.addr %s900, 16
        %s905 = sadd.s32 %s903, %s904
        %s906 = smul.addr %s905, 8
        %s907 = scalar_lea.vmem %s5, %s906
        // Predicated region
        $region61: #{tpu_custom_call.1} parent=39 // pred_check
          %p908 = pneg %p195
        $region62: #{tpu_custom_call.1} parent=39 // pred_check_branch
          %910 = sbr.rel (%p908) target = $region64
        $region63: #{tpu_custom_call.1} parent=39 // pred_region
          %s911 = smul.u32 %s29, %s28
        $region64: #{tpu_custom_call.1} parent=39 // pred_fallthru
          _
      $region40: #{tpu_custom_call.1} parent=5 // pred_fallthru
        _
      %p912 = scmp.le.s32.totalorder 2, %s17
      // Predicated region
      $region65: #{tpu_custom_call.1} parent=5 // pred_check
        %p913 = pneg %p912
      $region66: #{tpu_custom_call.1} parent=5 // pred_check_branch
        %915 = sbr.rel (%p913) target = $region68
      $region67: #{tpu_custom_call.1} parent=5 // pred_region
        %s916 = ssub.s32 %s17, 2
        // Predicated region
        $region69: #{tpu_custom_call.1} parent=67 // pred_check
          %p917 = pneg %p201
        $region70: #{tpu_custom_call.1} parent=67 // pred_check_branch
          %919 = sbr.rel (%p917) target = $region72
        $region71: #{tpu_custom_call.1} parent=67 // pred_region
          %s920 = smul.u32 %s32, %s31
          %p921 = scmp.lt.s32.totalorder %s30, 1
          %s922 = scalar_select %p921, %s30, 1
          %p923 = scmp.lt.s32.totalorder %s920, 3
          %s924 = scalar_select %p923, %s920, 3
          %s925 = smul.addr %s924, 4
          %s926 = smul.addr %s922, 16
          %s927 = sadd.s32 %s925, %s926
          %s928 = smul.addr %s927, 8
          %s929 = scalar_lea.vmem %s5, %s928
        $region72: #{tpu_custom_call.1} parent=67 // pred_fallthru
          _
      $region68: #{tpu_custom_call.1} parent=5 // pred_fallthru
        _
    $region6: #{tpu_custom_call.1} parent=1 // loop_footer
      %s21 = sadd.s32 1, %s17
    $region7: #{tpu_custom_call.1} parent=1 // loop_footer_branch
      %16 = sbr.rel target = $region3
    $region8: #{tpu_custom_call.1} parent=1 // loop_exit
      _
    %930 = vsyncpa [#allocation6], 1
    %s931 = scalar_lea.sflag [#allocation6], 1
    %932 = vsyncpa %s931, 1
    %933 = vsyncpa [#allocation8], 1
    %s934 = scalar_lea.sflag [#allocation8], 1
    %935 = vsyncpa %s934, 1

</llo_original>
